<compile_context>
chip_gen: v6e
topology: v6e:2x2x1
jax: 0.10.0
libtpu: 0.0.40
codegen_flags: <defaults>
</compile_context>

<pallas_src>
import jax
import jax.numpy as jnp
from jax.experimental import pallas as pl
from jax.experimental.pallas import tpu as pltpu

# ---------------- hyper-params (Hyper_Param stand-ins) ----------------
NUM_SENSORS = 4
NSO = 4                          # num_sensor_output (per-sensor slice of the state)
STATE_DIM = NUM_SENSORS * NSO    # 16
HE = 16                          # sensor-encoder hidden
ENC_H = NUM_SENSORS * HE         # 64, block-diag hidden width
LS = 8                           # per-sensor latent (transmitted symbols)
LAT = NUM_SENSORS * LS           # 32, concatenated latent
HD = 32                          # sensor-decoder hidden
NUM_NEURONS = 32
ACTION_DIM = 4
LC = 8                           # CU latent
SNR_DB = 10.0
_ISCOMPLEX = False
NOISE_STD = float(jnp.sqrt(10.0 ** (-SNR_DB / 10.0) * (0.5 if _ISCOMPLEX else 1.0)))
EPS = 1e-8
SQRT_LS = float(LS) ** 0.5
SQRT_LC = float(LC) ** 0.5

BATCH = 128
TB = 128                         # single grid step on v5e/v6e; set 64 on v7x to try 2-TC sharding
OUT_PAD = 128                    # lane-dense output slab width
IN_PAD = 128                     # lane-dense input slab width

# ---------------- input-slab lane layout (f32) ----------------
C_STATE = 0                      # lanes  0:16   state
C_N1 = 32                        # lanes 32:64   sensor-link AWGN draws
C_N2 = 64                        # lanes 64:72   CU-link AWGN draws

# ---------------- weight-slab row layout (bf16, 128 lanes wide, 16-aligned blocks) ----------------
R_W1 = 0                         # (16, 64)  block-diag encoder layer 1
R_W2 = 16                        # (64, 32)  block-diag encoder layer 2
R_WD1 = 80                       # (32, 32)  sensor-decoder layer 1
R_WF = 112                       # (32, 32)  fused dec_w2 @ mlp_w1
R_WM2 = 144                      # (32, 4)   mlp output layer
R_WCE = 176                      # (4, 8)    CU encoder (block padded to 16 rows)
R_WCD = 192                      # (8, 128)  CU decoder, zero-padded to 128 cols (padded to 16 rows)
R_SEG = 208                      # (32, 32)  per-sensor block-of-ones indicator (NormalizeTX)
R_B_ENC1 = 240                   # bias rows (one row each, group starts 16-aligned)
R_B_ENC2 = 241
R_B_D1 = 242
R_B_F = 243
R_B_M2 = 244
R_B_CE = 245
R_B_CD = 246
SLAB_ROWS = 256                  # multiple of 16 (bf16 packed sublanes)


# =============================== kernel ===============================
def actor_kernel(in_ref, w_ref, out_ref):
    f32 = jnp.float32
    bf16 = jnp.bfloat16

    x = in_ref[:, C_STATE:C_STATE + STATE_DIM]                       # (TB, 16) f32
    n1 = in_ref[:, C_N1:C_N1 + LAT]                                  # (TB, 32) f32
    n2 = in_ref[:, C_N2:C_N2 + LC]                                   # (TB, 8)  f32

    # --- 4 sensor encoders fused as two block-diagonal matmuls (bf16 MXU, f32 acc) ---
    w_e1 = w_ref[R_W1:R_W1 + STATE_DIM, 0:ENC_H]                     # (16, 64) bf16
    b_e1 = w_ref[R_B_ENC1:R_B_ENC1 + 1, 0:ENC_H].astype(f32)         # (1, 64)
    w_e2 = w_ref[R_W2:R_W2 + ENC_H, 0:LAT]                           # (64, 32) bf16
    b_e2 = w_ref[R_B_ENC2:R_B_ENC2 + 1, 0:LAT].astype(f32)           # (1, 32)
    h = jnp.maximum(
        jnp.dot(x.astype(bf16), w_e1, preferred_element_type=f32) + b_e1, 0.0)
    z = jnp.dot(h.astype(bf16), w_e2, preferred_element_type=f32) + b_e2   # (TB, 32)

    # --- per-sensor NormalizeTX: one block-of-ones matmul + one EUP rsqrt ---
    seg = w_ref[R_SEG:R_SEG + LAT, 0:LAT]                            # (32, 32) bf16 indicator
    sumsq = jnp.dot((z * z).astype(bf16), seg, preferred_element_type=f32)  # (TB, 32), per-sensor sum replicated
    z = z * (SQRT_LS * jax.lax.rsqrt(sumsq + EPS))                   # (TB, 32)

    # --- AWGN channel (sensor -> CU link) ---
    y = z + NOISE_STD * n1

    # --- SensorDecoder layer 1 ---
    w_d1 = w_ref[R_WD1:R_WD1 + LAT, 0:HD]
    b_d1 = w_ref[R_B_D1:R_B_D1 + 1, 0:HD].astype(f32)
    h = jnp.maximum(
        jnp.dot(y.astype(bf16), w_d1, preferred_element_type=f32) + b_d1, 0.0)

    # --- fused (SensorDecoder layer 2  @  MLP layer 1), ReLU ---
    w_f = w_ref[R_WF:R_WF + HD, 0:NUM_NEURONS]
    b_f = w_ref[R_B_F:R_B_F + 1, 0:NUM_NEURONS].astype(f32)
    h = jnp.maximum(
        jnp.dot(h.astype(bf16), w_f, preferred_element_type=f32) + b_f, 0.0)

    # --- MLP output (Sigmoid) ---
    w_m2 = w_ref[R_WM2:R_WM2 + NUM_NEURONS, 0:ACTION_DIM]
    b_m2 = w_ref[R_B_M2:R_B_M2 + 1, 0:ACTION_DIM].astype(f32)
    decision = jax.nn.sigmoid(
        jnp.dot(h.astype(bf16), w_m2, preferred_element_type=f32) + b_m2)   # (TB, 4)

    # --- CUEncoder + NormalizeTX + AWGN (CU -> actuator link) ---
    w_ce = w_ref[R_WCE:R_WCE + ACTION_DIM, 0:LC]
    b_ce = w_ref[R_B_CE:R_B_CE + 1, 0:LC].astype(f32)
    ce = jnp.dot(decision.astype(bf16), w_ce, preferred_element_type=f32) + b_ce  # (TB, 8)
    nrm = jnp.sum(ce * ce, axis=-1, keepdims=True)
    ce = ce * (SQRT_LC * jax.lax.rsqrt(nrm + EPS))
    y2 = ce + NOISE_STD * n2

    # --- CUDecoder (zero-padded to 128 output lanes -> unmasked lane-dense store) ---
    w_cd = w_ref[R_WCD:R_WCD + LC, :]                                # (8, 128) bf16
    b_cd = w_ref[R_B_CD:R_B_CD + 1, :].astype(f32)                   # (1, 128)
    out_ref[...] = jax.nn.sigmoid(
        jnp.dot(y2.astype(bf16), w_cd, preferred_element_type=f32) + b_cd)  # (TB, 128)


# =============================== wrapper ===============================
@jax.jit
def actor_forward(in_slab, weight_slab):
    """in_slab: (B, 128) f32 fused [state | noise1 | noise2] slab.
    Returns the lane-dense (B, 128) padded action slab; consumers slice [:, :ACTION_DIM]."""
    b = in_slab.shape[0]
    assert b % TB == 0
    return pl.pallas_call(
        actor_kernel,
        out_shape=jax.ShapeDtypeStruct((b, OUT_PAD), jnp.float32),
        grid_spec=pltpu.PrefetchScalarGridSpec(
            num_scalar_prefetch=0,
            grid=(b // TB,),
            in_specs=[
                pl.BlockSpec((TB, IN_PAD), lambda i: (i, 0)),
                pl.BlockSpec((SLAB_ROWS, 128), lambda i: (0, 0)),
            ],
            out_specs=pl.BlockSpec((TB, OUT_PAD), lambda i: (i, 0)),
        ),
        compiler_params=pltpu.CompilerParams(
            dimension_semantics=("parallel",)),
    )(in_slab, weight_slab)


# =============================== params ===============================
def init_params(key):
    ks = jax.random.split(key, 8)
    s = 0.1

    def w(k, shape):
        return (s * jax.random.normal(k, shape)).astype(jnp.float32)

    return {
        # stacked per-sensor encoder weights: (4, nso, He), (4, He, Ls)
        "enc_w1": w(ks[0], (NUM_SENSORS, NSO, HE)),
        "enc_b1": jnp.zeros((NUM_SENSORS, HE), jnp.float32),
        "enc_w2": w(ks[1], (NUM_SENSORS, HE, LS)),
        "enc_b2": jnp.zeros((NUM_SENSORS, LS), jnp.float32),
        "dec_w1": w(ks[2], (LAT, HD)),
        "dec_b1": jnp.zeros((1, HD), jnp.float32),
        "dec_w2": w(ks[3], (HD, STATE_DIM)),
        "dec_b2": jnp.zeros((1, STATE_DIM), jnp.float32),
        "mlp_w1": w(ks[4], (STATE_DIM, NUM_NEURONS)),
        "mlp_b1": jnp.zeros((1, NUM_NEURONS), jnp.float32),
        "mlp_w2": w(ks[5], (NUM_NEURONS, ACTION_DIM)),
        "mlp_b2": jnp.zeros((1, ACTION_DIM), jnp.float32),
        "cue_w": w(ks[6], (ACTION_DIM, LC)),
        "cue_b": jnp.zeros((1, LC), jnp.float32),
        "cud_w": w(ks[7], (LC, ACTION_DIM)),
        "cud_b": jnp.zeros((1, ACTION_DIM), jnp.float32),
    }


def pack_params(p):
    """Offline: block-diagonalize encoders, fold dec_w2@mlp_w1, bake the NormalizeTX
    indicator, pack everything into one 16-aligned bf16 slab."""
    w1 = jnp.zeros((STATE_DIM, ENC_H), jnp.float32)
    w2 = jnp.zeros((ENC_H, LAT), jnp.float32)
    b1 = jnp.zeros((1, ENC_H), jnp.float32)
    b2 = jnp.zeros((1, LAT), jnp.float32)
    for i in range(NUM_SENSORS):
        w1 = w1.at[i * NSO:(i + 1) * NSO, i * HE:(i + 1) * HE].set(p["enc_w1"][i])
        w2 = w2.at[i * HE:(i + 1) * HE, i * LS:(i + 1) * LS].set(p["enc_w2"][i])
        b1 = b1.at[0, i * HE:(i + 1) * HE].set(p["enc_b1"][i])
        b2 = b2.at[0, i * LS:(i + 1) * LS].set(p["enc_b2"][i])

    # fold SensorDecoder layer-2 into MLP layer-1 (no nonlinearity in between;
    # the reconstructed-state intermediate is not used elsewhere in Actor.forward)
    w_fused = p["dec_w2"] @ p["mlp_w1"]                              # (HD, NN)
    b_fused = p["mlp_b1"] + p["dec_b2"] @ p["mlp_w1"]                # (1, NN)

    # lane-pad CU decoder to 128 output columns
    w_cd = jnp.zeros((LC, OUT_PAD), jnp.float32).at[:, :ACTION_DIM].set(p["cud_w"])
    b_cd = jnp.zeros((1, OUT_PAD), jnp.float32).at[:, :ACTION_DIM].set(p["cud_b"])

    # per-sensor block-of-ones indicator: seg[k, j] = 1 iff k and j belong to the same sensor
    idx = jnp.arange(LAT) // LS
    seg = (idx[:, None] == idx[None, :]).astype(jnp.float32)         # (32, 32), exact in bf16

    slab = jnp.zeros((SLAB_ROWS, 128), jnp.float32)

    def put(s, r, mat):
        mat = jnp.atleast_2d(mat)
        return s.at[r:r + mat.shape[0], :mat.shape[1]].set(mat)

    slab = put(slab, R_W1, w1)
    slab = put(slab, R_W2, w2)
    slab = put(slab, R_WD1, p["dec_w1"])
    slab = put(slab, R_WF, w_fused)
    slab = put(slab, R_WM2, p["mlp_w2"])
    slab = put(slab, R_WCE, p["cue_w"])
    slab = put(slab, R_WCD, w_cd)
    slab = put(slab, R_SEG, seg)
    slab = put(slab, R_B_ENC1, b1)
    slab = put(slab, R_B_ENC2, b2)
    slab = put(slab, R_B_D1, p["dec_b1"])
    slab = put(slab, R_B_F, b_fused)
    slab = put(slab, R_B_M2, p["mlp_b2"])
    slab = put(slab, R_B_CE, p["cue_b"])
    slab = put(slab, R_B_CD, b_cd)
    return slab.astype(jnp.bfloat16)


def pack_inputs(state, noise1, noise2):
    """Fuse state + both AWGN draws into one lane-dense (B, 128) f32 slab."""
    b = state.shape[0]
    slab = jnp.zeros((b, IN_PAD), jnp.float32)
    slab = slab.at[:, C_STATE:C_STATE + STATE_DIM].set(state)
    slab = slab.at[:, C_N1:C_N1 + LAT].set(noise1)
    slab = slab.at[:, C_N2:C_N2 + LC].set(noise2)
    return slab


# ---------------- pure-JAX reference (mirrors the original torch forward) ----------------
def actor_reference(state, p, noise1, noise2):
    parts = []
    for i in range(NUM_SENSORS):
        xi = state[:, i * NSO:(i + 1) * NSO]
        h = jax.nn.relu(xi @ p["enc_w1"][i] + p["enc_b1"][i])
        z = h @ p["enc_w2"][i] + p["enc_b2"][i]
        nrm = jnp.sqrt(jnp.sum(z * z, axis=-1, keepdims=True) + EPS)
        parts.append(z * (SQRT_LS / nrm))
    lat = jnp.concatenate(parts, axis=-1)
    y = lat + NOISE_STD * noise1
    h = jax.nn.relu(y @ p["dec_w1"] + p["dec_b1"])
    dec = h @ p["dec_w2"] + p["dec_b2"]
    h = jax.nn.relu(dec @ p["mlp_w1"] + p["mlp_b1"])
    decision = jax.nn.sigmoid(h @ p["mlp_w2"] + p["mlp_b2"])
    ce = decision @ p["cue_w"] + p["cue_b"]
    nrm = jnp.sqrt(jnp.sum(ce * ce, axis=-1, keepdims=True) + EPS)
    ce = ce * (SQRT_LC / nrm)
    y2 = ce + NOISE_STD * noise2
    return jax.nn.sigmoid(y2 @ p["cud_w"] + p["cud_b"])


if __name__ == "__main__":
    root = jax.random.PRNGKey(0)
    k_param, k_state, k_n1, k_n2 = jax.random.split(root, 4)

    params = init_params(k_param)
    state = jax.random.normal(k_state, (BATCH, STATE_DIM), dtype=jnp.float32)
    # deterministic AWGN draws (replaces torch.randint-seeded Channel noise)
    noise1 = jax.random.normal(k_n1, (BATCH, LAT), dtype=jnp.float32)
    noise2 = jax.random.normal(k_n2, (BATCH, LC), dtype=jnp.float32)

    weight_slab = pack_params(params)          # (256, 128) bf16
    in_slab = pack_inputs(state, noise1, noise2)  # (128, 128) f32

    action_pad = actor_forward(in_slab, weight_slab)
    jax.block_until_ready(action_pad)
    action = action_pad[:, :ACTION_DIM]        # consumer-side slice of the lane-dense slab

    ref = actor_reference(state, params, noise1, noise2)

    assert action.shape == (BATCH, ACTION_DIM)
    assert bool(jnp.all(jnp.isfinite(action)))
    assert bool(jnp.all((action >= 0.0) & (action <= 1.0)))          # Sigmoid output
    # bf16 weights/matmul inputs vs f32 reference -> relaxed tolerance
    assert bool(jnp.allclose(action, ref, atol=3e-2, rtol=3e-2))
    print("KERNEL_OK")
</pallas_src>

<mosaic_0001>
module attributes {stable_mosaic.version = 11 : i64} {
  func.func @actor_kernel(%arg0: i32, %arg1: memref<128x128xf32, #tpu.memory_space<vmem>>, %arg2: memref<256x128xbf16, #tpu.memory_space<vmem>>, %arg3: memref<128x128xf32, #tpu.memory_space<vmem>>) attributes {dimension_semantics = [#tpu.dimension_semantics<parallel>], iteration_bounds = array<i64: 1>, scalar_prefetch = 0 : i64, scratch_operands = 0 : i64, tpu.core_type = #tpu.core_type<tc>, window_params = [{transform_indices = @transform_0, window_bounds = array<i64: 128, 128>}, {pipeline_mode = #tpu.pipeline_mode<synchronous>, transform_indices = @transform_1, window_bounds = array<i64: 256, 128>}, {transform_indices = @transform_2, window_bounds = array<i64: 128, 128>}]} {
    %c0 = arith.constant 0 : index
    %c0_0 = arith.constant 0 : index
    %0 = vector.load %arg1[%c0, %c0_0] : memref<128x128xf32, #tpu.memory_space<vmem>>, vector<128x16xf32>
    %c0_1 = arith.constant 0 : index
    %c32 = arith.constant 32 : index
    %1 = vector.load %arg1[%c0_1, %c32] : memref<128x128xf32, #tpu.memory_space<vmem>>, vector<128x32xf32>
    %c0_2 = arith.constant 0 : index
    %c64 = arith.constant 64 : index
    %2 = vector.load %arg1[%c0_2, %c64] : memref<128x128xf32, #tpu.memory_space<vmem>>, vector<128x8xf32>
    %c0_3 = arith.constant 0 : index
    %c0_4 = arith.constant 0 : index
    %3 = vector.load %arg2[%c0_3, %c0_4] : memref<256x128xbf16, #tpu.memory_space<vmem>>, vector<16x64xbf16>
    %c240 = arith.constant 240 : index
    %c0_5 = arith.constant 0 : index
    %4 = vector.load %arg2[%c240, %c0_5] : memref<256x128xbf16, #tpu.memory_space<vmem>>, vector<1x64xbf16>
    %5 = arith.extf %4 : vector<1x64xbf16> to vector<1x64xf32>
    %c16 = arith.constant 16 : index
    %c0_6 = arith.constant 0 : index
    %6 = vector.load %arg2[%c16, %c0_6] : memref<256x128xbf16, #tpu.memory_space<vmem>>, vector<64x32xbf16>
    %c241 = arith.constant 241 : index
    %c0_7 = arith.constant 0 : index
    %7 = vector.load %arg2[%c241, %c0_7] : memref<256x128xbf16, #tpu.memory_space<vmem>>, vector<1x32xbf16>
    %8 = arith.extf %7 : vector<1x32xbf16> to vector<1x32xf32>
    %9 = arith.truncf %0 : vector<128x16xf32> to vector<128x16xbf16>
    %cst = arith.constant dense<0.000000e+00> : vector<128x64xf32>
    %10 = tpu.matmul %9, %3, %cst {dimension_numbers = #tpu.dot_dimension_numbers<[1], [0], [0], [1], [0, 0, 1, 1], [], []>} : vector<128x16xbf16>, vector<16x64xbf16>, vector<128x64xf32> -> vector<128x64xf32>
    %11 = vector.broadcast %5 : vector<1x64xf32> to vector<128x64xf32>
    %12 = arith.addf %10, %11 : vector<128x64xf32>
    %cst_8 = arith.constant 0.000000e+00 : f32
    %13 = vector.broadcast %cst_8 : f32 to vector<128x64xf32>
    %14 = arith.maximumf %12, %13 : vector<128x64xf32>
    %15 = arith.truncf %14 : vector<128x64xf32> to vector<128x64xbf16>
    %cst_9 = arith.constant dense<0.000000e+00> : vector<128x32xf32>
    %16 = tpu.matmul %15, %6, %cst_9 {dimension_numbers = #tpu.dot_dimension_numbers<[1], [0], [0], [1], [0, 0, 1, 1], [], []>} : vector<128x64xbf16>, vector<64x32xbf16>, vector<128x32xf32> -> vector<128x32xf32>
    %17 = vector.broadcast %8 : vector<1x32xf32> to vector<128x32xf32>
    %18 = arith.addf %16, %17 : vector<128x32xf32>
    %c208 = arith.constant 208 : index
    %c0_10 = arith.constant 0 : index
    %19 = vector.load %arg2[%c208, %c0_10] : memref<256x128xbf16, #tpu.memory_space<vmem>>, vector<32x32xbf16>
    %20 = arith.mulf %18, %18 : vector<128x32xf32>
    %21 = arith.truncf %20 : vector<128x32xf32> to vector<128x32xbf16>
    %cst_11 = arith.constant dense<0.000000e+00> : vector<128x32xf32>
    %22 = tpu.matmul %21, %19, %cst_11 {dimension_numbers = #tpu.dot_dimension_numbers<[1], [0], [0], [1], [0, 0, 1, 1], [], []>} : vector<128x32xbf16>, vector<32x32xbf16>, vector<128x32xf32> -> vector<128x32xf32>
    %cst_12 = arith.constant 9.99999993E-9 : f32
    %23 = vector.broadcast %cst_12 : f32 to vector<128x32xf32>
    %24 = arith.addf %22, %23 : vector<128x32xf32>
    %25 = math.rsqrt %24 : vector<128x32xf32>
    %cst_13 = arith.constant 2.82842708 : f32
    %26 = vector.broadcast %cst_13 : f32 to vector<128x32xf32>
    %27 = arith.mulf %26, %25 : vector<128x32xf32>
    %28 = arith.mulf %18, %27 : vector<128x32xf32>
    %cst_14 = arith.constant 0.316227764 : f32
    %29 = vector.broadcast %cst_14 : f32 to vector<128x32xf32>
    %30 = arith.mulf %29, %1 : vector<128x32xf32>
    %31 = arith.addf %28, %30 : vector<128x32xf32>
    %c80 = arith.constant 80 : index
    %c0_15 = arith.constant 0 : index
    %32 = vector.load %arg2[%c80, %c0_15] : memref<256x128xbf16, #tpu.memory_space<vmem>>, vector<32x32xbf16>
    %c242 = arith.constant 242 : index
    %c0_16 = arith.constant 0 : index
    %33 = vector.load %arg2[%c242, %c0_16] : memref<256x128xbf16, #tpu.memory_space<vmem>>, vector<1x32xbf16>
    %34 = arith.extf %33 : vector<1x32xbf16> to vector<1x32xf32>
    %35 = arith.truncf %31 : vector<128x32xf32> to vector<128x32xbf16>
    %cst_17 = arith.constant dense<0.000000e+00> : vector<128x32xf32>
    %36 = tpu.matmul %35, %32, %cst_17 {dimension_numbers = #tpu.dot_dimension_numbers<[1], [0], [0], [1], [0, 0, 1, 1], [], []>} : vector<128x32xbf16>, vector<32x32xbf16>, vector<128x32xf32> -> vector<128x32xf32>
    %37 = vector.broadcast %34 : vector<1x32xf32> to vector<128x32xf32>
    %38 = arith.addf %36, %37 : vector<128x32xf32>
    %cst_18 = arith.constant 0.000000e+00 : f32
    %39 = vector.broadcast %cst_18 : f32 to vector<128x32xf32>
    %40 = arith.maximumf %38, %39 : vector<128x32xf32>
    %c112 = arith.constant 112 : index
    %c0_19 = arith.constant 0 : index
    %41 = vector.load %arg2[%c112, %c0_19] : memref<256x128xbf16, #tpu.memory_space<vmem>>, vector<32x32xbf16>
    %c243 = arith.constant 243 : index
    %c0_20 = arith.constant 0 : index
    %42 = vector.load %arg2[%c243, %c0_20] : memref<256x128xbf16, #tpu.memory_space<vmem>>, vector<1x32xbf16>
    %43 = arith.extf %42 : vector<1x32xbf16> to vector<1x32xf32>
    %44 = arith.truncf %40 : vector<128x32xf32> to vector<128x32xbf16>
    %cst_21 = arith.constant dense<0.000000e+00> : vector<128x32xf32>
    %45 = tpu.matmul %44, %41, %cst_21 {dimension_numbers = #tpu.dot_dimension_numbers<[1], [0], [0], [1], [0, 0, 1, 1], [], []>} : vector<128x32xbf16>, vector<32x32xbf16>, vector<128x32xf32> -> vector<128x32xf32>
    %46 = vector.broadcast %43 : vector<1x32xf32> to vector<128x32xf32>
    %47 = arith.addf %45, %46 : vector<128x32xf32>
    %cst_22 = arith.constant 0.000000e+00 : f32
    %48 = vector.broadcast %cst_22 : f32 to vector<128x32xf32>
    %49 = arith.maximumf %47, %48 : vector<128x32xf32>
    %c144 = arith.constant 144 : index
    %c0_23 = arith.constant 0 : index
    %50 = vector.load %arg2[%c144, %c0_23] : memref<256x128xbf16, #tpu.memory_space<vmem>>, vector<32x4xbf16>
    %c244 = arith.constant 244 : index
    %c0_24 = arith.constant 0 : index
    %51 = vector.load %arg2[%c244, %c0_24] : memref<256x128xbf16, #tpu.memory_space<vmem>>, vector<1x4xbf16>
    %52 = arith.extf %51 : vector<1x4xbf16> to vector<1x4xf32>
    %53 = arith.truncf %49 : vector<128x32xf32> to vector<128x32xbf16>
    %cst_25 = arith.constant dense<0.000000e+00> : vector<128x4xf32>
    %54 = tpu.matmul %53, %50, %cst_25 {dimension_numbers = #tpu.dot_dimension_numbers<[1], [0], [0], [1], [0, 0, 1, 1], [], []>} : vector<128x32xbf16>, vector<32x4xbf16>, vector<128x4xf32> -> vector<128x4xf32>
    %55 = vector.broadcast %52 : vector<1x4xf32> to vector<128x4xf32>
    %56 = arith.addf %54, %55 : vector<128x4xf32>
    %57 = arith.negf %56 : vector<128x4xf32>
    %58 = math.exp %57 : vector<128x4xf32>
    %cst_26 = arith.constant 1.000000e+00 : f32
    %59 = vector.broadcast %cst_26 : f32 to vector<128x4xf32>
    %60 = arith.addf %59, %58 : vector<128x4xf32>
    %61 = arith.divf %59, %60 : vector<128x4xf32>
    %c176 = arith.constant 176 : index
    %c0_27 = arith.constant 0 : index
    %62 = vector.load %arg2[%c176, %c0_27] : memref<256x128xbf16, #tpu.memory_space<vmem>>, vector<4x8xbf16>
    %c245 = arith.constant 245 : index
    %c0_28 = arith.constant 0 : index
    %63 = vector.load %arg2[%c245, %c0_28] : memref<256x128xbf16, #tpu.memory_space<vmem>>, vector<1x8xbf16>
    %64 = arith.extf %63 : vector<1x8xbf16> to vector<1x8xf32>
    %65 = arith.truncf %61 : vector<128x4xf32> to vector<128x4xbf16>
    %cst_29 = arith.constant dense<0.000000e+00> : vector<128x8xf32>
    %66 = tpu.matmul %65, %62, %cst_29 {dimension_numbers = #tpu.dot_dimension_numbers<[1], [0], [0], [1], [0, 0, 1, 1], [], []>} : vector<128x4xbf16>, vector<4x8xbf16>, vector<128x8xf32> -> vector<128x8xf32>
    %67 = vector.broadcast %64 : vector<1x8xf32> to vector<128x8xf32>
    %68 = arith.addf %66, %67 : vector<128x8xf32>
    %69 = arith.mulf %68, %68 : vector<128x8xf32>
    %cst_30 = arith.constant dense<0.000000e+00> : vector<128xf32>
    %70 = vector.multi_reduction <add>, %69, %cst_30 [1] : vector<128x8xf32> to vector<128xf32>
    %71 = vector.shape_cast %70 : vector<128xf32> to vector<128x1xf32>
    %cst_31 = arith.constant 9.99999993E-9 : f32
    %72 = vector.broadcast %cst_31 : f32 to vector<128x1xf32>
    %73 = arith.addf %71, %72 : vector<128x1xf32>
    %74 = math.rsqrt %73 : vector<128x1xf32>
    %cst_32 = arith.constant 2.82842708 : f32
    %75 = vector.broadcast %cst_32 : f32 to vector<128x1xf32>
    %76 = arith.mulf %75, %74 : vector<128x1xf32>
    %77 = vector.broadcast %76 : vector<128x1xf32> to vector<128x8xf32>
    %78 = arith.mulf %68, %77 : vector<128x8xf32>
    %cst_33 = arith.constant 0.316227764 : f32
    %79 = vector.broadcast %cst_33 : f32 to vector<128x8xf32>
    %80 = arith.mulf %79, %2 : vector<128x8xf32>
    %81 = arith.addf %78, %80 : vector<128x8xf32>
    %c192 = arith.constant 192 : index
    %c0_34 = arith.constant 0 : index
    %82 = vector.load %arg2[%c192, %c0_34] : memref<256x128xbf16, #tpu.memory_space<vmem>>, vector<8x128xbf16>
    %c246 = arith.constant 246 : index
    %c0_35 = arith.constant 0 : index
    %83 = vector.load %arg2[%c246, %c0_35] : memref<256x128xbf16, #tpu.memory_space<vmem>>, vector<1x128xbf16>
    %84 = arith.extf %83 : vector<1x128xbf16> to vector<1x128xf32>
    %85 = arith.truncf %81 : vector<128x8xf32> to vector<128x8xbf16>
    %cst_36 = arith.constant dense<0.000000e+00> : vector<128x128xf32>
    %86 = tpu.matmul %85, %82, %cst_36 {dimension_numbers = #tpu.dot_dimension_numbers<[1], [0], [0], [1], [0, 0, 1, 1], [], []>} : vector<128x8xbf16>, vector<8x128xbf16>, vector<128x128xf32> -> vector<128x128xf32>
    %87 = vector.broadcast %84 : vector<1x128xf32> to vector<128x128xf32>
    %88 = arith.addf %86, %87 : vector<128x128xf32>
    %89 = arith.negf %88 : vector<128x128xf32>
    %90 = math.exp %89 : vector<128x128xf32>
    %cst_37 = arith.constant 1.000000e+00 : f32
    %91 = vector.broadcast %cst_37 : f32 to vector<128x128xf32>
    %92 = arith.addf %91, %90 : vector<128x128xf32>
    %93 = arith.divf %91, %92 : vector<128x128xf32>
    %c0_38 = arith.constant 0 : index
    %c0_39 = arith.constant 0 : index
    %94 = vector.load %arg3[%c0_38, %c0_39] : memref<128x128xf32, #tpu.memory_space<vmem>>, vector<128x128xf32>
    tpu.vector_store %arg3[%c0_38, %c0_39], %93 {strides = array<i32>} : memref<128x128xf32, #tpu.memory_space<vmem>>, vector<128x128xf32>,
    return
  }
  func.func @transform_0(%arg0: i32) -> (i32, i32) {
    %c0_i32 = arith.constant 0 : i32
    %c0_i32_0 = arith.constant 0 : i32
    return %arg0, %c0_i32 : i32, i32
  }
  func.func @transform_1(%arg0: i32) -> (i32, i32) {
    %c0_i32 = arith.constant 0 : i32
    %c0_i32_0 = arith.constant 0 : i32
    %c0_i32_1 = arith.constant 0 : i32
    return %c0_i32, %c0_i32_0 : i32, i32
  }
  func.func @transform_2(%arg0: i32) -> (i32, i32) {
    %c0_i32 = arith.constant 0 : i32
    %c0_i32_0 = arith.constant 0 : i32
    return %arg0, %c0_i32 : i32, i32
  }
}

</mosaic_0001>

<llo_original>
// kernel: actor_forward.1
$region0: #{actor_forward.1}
  #allocation0 [shape = 'u32[]', space=smem, size = 0x4, offset = 0x4, fixed_abs, tag = 'smem constant byte address 0x4 - core index']
  #allocation1 [shape = 'u32[144,128]{1,0:T(1,128)}', space=vmem, size = 0x12000, scoped, tag = 'internal scratch']
  %s0 = inlined_call_operand.hbm [shape: f32[128,128], index: 0, kind: input, shape index: {}]
  %s1 = inlined_call_operand.hbm [shape: bf16[256,128], index: 1, kind: input, shape index: {}]
  %s2 = inlined_call_operand.hbm [shape: f32[128,128], index: 2, kind: output, shape index: {}]
  %s3 = sld [smem:[#allocation0]]
  $region26: #{actor_forward.1} parent=0
    _
  %s5 = ssub.s32 1, %s3
  %s6 = scalar_select 0, %s5, %s3
  $region1: #{actor_forward.1} parent=0
    #allocation2 [shape = 'u8[65536]{0}', space=vmem, size = 0x10000, scoped, tag = 'input window, operand 0, single buffered']
    #allocation3 [shape = 's32[1]{0}', space=sflag, size = 0x4, scoped, tag = 'scoped memory for actor_forward.1']
    #allocation4 [shape = 's32[1]{0}', space=sflag, size = 0x4, scoped, tag = 'scoped memory for actor_forward.1']
    #allocation5 [shape = 'u8[65536]{0}', space=vmem, size = 0x10000, scoped, tag = 'input window, operand 1, single buffered']
    #allocation6 [shape = 's32[1]{0}', space=sflag, size = 0x4, scoped, tag = 'scoped memory for actor_forward.1']
    #allocation7 [shape = 'u8[65536]{0}', space=vmem, size = 0x10000, scoped, tag = 'output window, operand 0, single buffered']
    %7 = vsyncpa [#allocation3], 0
    %8 = vsyncpa [#allocation6], 0
    %9 = vsyncpa [#allocation4], 0
    // Predicated region
    $region2: #{actor_forward.1} parent=1 // pred_check
      _
    $region3: #{actor_forward.1} parent=1 // pred_check_branch
      %11 = sbr.rel (0) target = $region5
    $region4: #{actor_forward.1} parent=1 // pred_region
      %s13 = ssub.s32 2048, 2048
      %14 = vsyncadd [#allocation3], %s13
      %s15 = sshll.u32 [#allocation2], 4
      %s16 = int_to_ptr.vmem [resolvable:$true] %s15
      %21 = dma.hbm_to_vmem [thread:$0]  %s0, 2048, %s16, [#allocation3], 128, 128, 8
    $region5: #{actor_forward.1} parent=1 // pred_fallthru
      _
    // Predicated region
    $region6: #{actor_forward.1} parent=1 // pred_check
      _
    $region7: #{actor_forward.1} parent=1 // pred_check_branch
      %23 = sbr.rel (0) target = $region9
    $region8: #{actor_forward.1} parent=1 // pred_region
      %s25 = ssub.s32 2048, 2048
      %26 = vsyncadd [#allocation6], %s25
      %s27 = sshll.u32 [#allocation5], 4
      %s28 = int_to_ptr.vmem [resolvable:$true] %s27
      %33 = dma.hbm_to_vmem [thread:$0]  %s1, 2048, %s28, [#allocation6], 64, 64, 4
    $region9: #{actor_forward.1} parent=1 // pred_fallthru
      _
    // Predicated region
    $region10: #{actor_forward.1} parent=1 // pred_check
      _
    $region11: #{actor_forward.1} parent=1 // pred_check_branch
      %35 = sbr.rel (0) target = $region13
    $region12: #{actor_forward.1} parent=1 // pred_region
      %36 = dma.done [#allocation3], 2048
    $region13: #{actor_forward.1} parent=1 // pred_fallthru
      _
    // Predicated region
    $region14: #{actor_forward.1} parent=1 // pred_check
      _
    $region15: #{actor_forward.1} parent=1 // pred_check_branch
      %38 = sbr.rel (0) target = $region17
    $region16: #{actor_forward.1} parent=1 // pred_region
      %39 = dma.done [#allocation6], 2048
    $region17: #{actor_forward.1} parent=1 // pred_fallthru
      _
    %v41 = vld [vmem:[#allocation2] sm:$0xff]
    %v42 = vld [vmem:[#allocation2 + $0x8] sm:$0xff]
    %v43 = vld [vmem:[#allocation2 + $0x10] sm:$0xff]
    %v44 = vld [vmem:[#allocation2 + $0x18] sm:$0xff]
    %v45 = vld [vmem:[#allocation2 + $0x20] sm:$0xff]
    %v46 = vld [vmem:[#allocation2 + $0x28] sm:$0xff]
    %v47 = vld [vmem:[#allocation2 + $0x30] sm:$0xff]
    %v48 = vld [vmem:[#allocation2 + $0x38] sm:$0xff]
    %v49 = vld [vmem:[#allocation2 + $0x40] sm:$0xff]
    %v50 = vld [vmem:[#allocation2 + $0x48] sm:$0xff]
    %v51 = vld [vmem:[#allocation2 + $0x50] sm:$0xff]
    %v52 = vld [vmem:[#allocation2 + $0x58] sm:$0xff]
    %v53 = vld [vmem:[#allocation2 + $0x60] sm:$0xff]
    %v54 = vld [vmem:[#allocation2 + $0x68] sm:$0xff]
    %v55 = vld [vmem:[#allocation2 + $0x70] sm:$0xff]
    %v56 = vld [vmem:[#allocation2 + $0x78] sm:$0xff]
    %v57 = vld [vmem:[#allocation5] sm:$0xf]
    %v58 = vld [vmem:[#allocation5 + $0x4] sm:$0xf]
    %v59 = vld [vmem:[#allocation5 + $0x78] sm:$0x1]
    %v60 = vunpack.c.l.bf16 %v59
    %v61 = vld [vmem:[#allocation5 + $0x8] sm:$0xf]
    %v62 = vld [vmem:[#allocation5 + $0xc] sm:$0xf]
    %v63 = vld [vmem:[#allocation5 + $0x10] sm:$0xf]
    %v64 = vld [vmem:[#allocation5 + $0x14] sm:$0xf]
    %v65 = vld [vmem:[#allocation5 + $0x18] sm:$0xf]
    %v66 = vld [vmem:[#allocation5 + $0x1c] sm:$0xf]
    %v67 = vld [vmem:[#allocation5 + $0x20] sm:$0xf]
    %v68 = vld [vmem:[#allocation5 + $0x24] sm:$0xf]
    %v69 = vpack.c.bf16 %v42, %v41
    %v70 = vpack.c.bf16 %v44, %v43
    %v71 = vpack.c.bf16 %v46, %v45
    %v72 = vpack.c.bf16 %v48, %v47
    %v73 = vpack.c.bf16 %v50, %v49
    %v74 = vpack.c.bf16 %v52, %v51
    %v75 = vpack.c.bf16 %v54, %v53
    %v76 = vpack.c.bf16 %v56, %v55
    %v77 = vlaneseq
    %v78 = vshrl.u32 %v77, 7
    %v79 = vsub.s32 0, %v78
    %v80 = vrot.slane %v60, %v79
    %v83 = vunpack.c.l.b16 %v57
    %v84 = vunpack.c.l.b16 %v58
    %v85 = vpack.c.b16 %v84, %v83
    %vm87 = vcmask 130048
    %v89 = vsel %vm87, %v69, 0
    %v92 = vsel %vm87, %v70, 0
    %v95 = vsel %vm87, %v71, 0
    %v98 = vsel %vm87, %v72, 0
    %v101 = vsel %vm87, %v73, 0
    %v104 = vsel %vm87, %v74, 0
    %v107 = vsel %vm87, %v75, 0
    %v110 = vsel %vm87, %v76, 0
    %112 = vmatprep.subr.bf16.mxu0 0
    %113 = vmatpush1.bf16.msra.mxu0 0
    %114 = vmatprep.subr.bf16.mxu0 0
    %115 = vmatpush1.bf16.msra.mxu0 0
    %116 = vmatprep.subr.bf16.mxu0 0
    %117 = vmatpush1.bf16.msra.mxu0 0
    %118 = vmatprep.subr.bf16.mxu0 0
    %119 = vmatpush1.bf16.msra.mxu0 0
    %120 = vmatprep.subr.bf16.mxu0 0
    %121 = vmatpush1.bf16.msra.mxu0 0
    %122 = vmatprep.subr.bf16.mxu0 0
    %123 = vmatpush1.bf16.msra.mxu0 0
    %124 = vmatprep.subr.bf16.mxu0 0
    %125 = vmatpush1.bf16.msra.mxu0 0
    %126 = vmatprep.subr.bf16.mxu0 0
    %127 = vmatpush1.bf16.msra.mxu0 %v85
    %128 = vmatprep.subr.bf16.mxu0 0
    %129 = vmatpush2.bf16.msra.mxu0 0
    %130 = vmatprep.subr.bf16.mxu0 0
    %131 = vmatpush2.bf16.msra.mxu0 0
    %132 = vmatprep.subr.bf16.mxu0 0
    %133 = vmatpush2.bf16.msra.mxu0 0
    %134 = vmatprep.subr.bf16.mxu0 0
    %135 = vmatpush2.bf16.msra.mxu0 0
    %136 = vmatprep.subr.bf16.mxu0 0
    %137 = vmatpush2.bf16.msra.mxu0 0
    %138 = vmatprep.subr.bf16.mxu0 0
    %139 = vmatpush2.bf16.msra.mxu0 0
    %140 = vmatprep.subr.bf16.mxu0 0
    %141 = vmatpush2.bf16.msra.mxu0 0
    %142 = vmatprep.subr.bf16.mxu0 0
    %143 = vmatpush2.bf16.msra.mxu0 0
    %144 = vmatprep.mubr.bf16.mxu0 0
    %145 = vmatmul.mubr.bf16.gmra.mxu0 %v89
    %v146 = vpop.f32.mrf.mxu0
    %v147 = vadd.f32 %v80, %v146
    %v148 = vpop.f32.mrf.mxu0
    %v149 = vpop.f32.mrf.mxu0
    %v150 = vadd.f32 %v80, %v149
    %v151 = vpop.f32.mrf.mxu0
    %152 = vmatprep.mubr.bf16.mxu0 0
    %153 = vmatmul.mubr.bf16.gmra.mxu0 %v92
    %v154 = vpop.f32.mrf.mxu0
    %v155 = vadd.f32 %v80, %v154
    %v156 = vpop.f32.mrf.mxu0
    %v157 = vpop.f32.mrf.mxu0
    %v158 = vadd.f32 %v80, %v157
    %v159 = vpop.f32.mrf.mxu0
    %160 = vmatprep.mubr.bf16.mxu0 0
    %161 = vmatmul.mubr.bf16.gmra.mxu0 %v95
    %v162 = vpop.f32.mrf.mxu0
    %v163 = vadd.f32 %v80, %v162
    %v164 = vpop.f32.mrf.mxu0
    %v165 = vpop.f32.mrf.mxu0
    %v166 = vadd.f32 %v80, %v165
    %v167 = vpop.f32.mrf.mxu0
    %168 = vmatprep.mubr.bf16.mxu0 0
    %169 = vmatmul.mubr.bf16.gmra.mxu0 %v98
    %v170 = vpop.f32.mrf.mxu0
    %v171 = vadd.f32 %v80, %v170
    %v172 = vpop.f32.mrf.mxu0
    %v173 = vpop.f32.mrf.mxu0
    %v174 = vadd.f32 %v80, %v173
    %v175 = vpop.f32.mrf.mxu0
    %176 = vmatprep.mubr.bf16.mxu0 0
    %177 = vmatmul.mubr.bf16.gmra.mxu0 %v101
    %v178 = vpop.f32.mrf.mxu0
    %v179 = vadd.f32 %v80, %v178
    %v180 = vpop.f32.mrf.mxu0
    %v181 = vpop.f32.mrf.mxu0
    %v182 = vadd.f32 %v80, %v181
    %v183 = vpop.f32.mrf.mxu0
    %184 = vmatprep.mubr.bf16.mxu0 0
    %185 = vmatmul.mubr.bf16.gmra.mxu0 %v104
    %v186 = vpop.f32.mrf.mxu0
    %v187 = vadd.f32 %v80, %v186
    %v188 = vpop.f32.mrf.mxu0
    %v189 = vpop.f32.mrf.mxu0
    %v190 = vadd.f32 %v80, %v189
    %v191 = vpop.f32.mrf.mxu0
    %192 = vmatprep.mubr.bf16.mxu0 0
    %193 = vmatmul.mubr.bf16.gmra.mxu0 %v107
    %v194 = vpop.f32.mrf.mxu0
    %v195 = vadd.f32 %v80, %v194
    %v196 = vpop.f32.mrf.mxu0
    %v197 = vpop.f32.mrf.mxu0
    %v198 = vadd.f32 %v80, %v197
    %v199 = vpop.f32.mrf.mxu0
    %200 = vmatprep.mubr.bf16.mxu0 0
    %201 = vmatmul.mubr.bf16.gmra.mxu0 %v110
    %v202 = vpop.f32.mrf.mxu0
    %v203 = vadd.f32 %v80, %v202
    %v204 = vpop.f32.mrf.mxu0
    %v205 = vpop.f32.mrf.mxu0
    %v206 = vadd.f32 %v80, %v205
    %v207 = vpop.f32.mrf.mxu0
    %208 = vdwg.mxu0
    %v209 = vmax.f32 %v147, 0.0
    %v210 = vmax.f32 %v150, 0.0
    %v211 = vmax.f32 %v155, 0.0
    %v212 = vmax.f32 %v158, 0.0
    %v213 = vmax.f32 %v163, 0.0
    %v214 = vmax.f32 %v166, 0.0
    %v215 = vmax.f32 %v171, 0.0
    %v216 = vmax.f32 %v174, 0.0
    %v217 = vmax.f32 %v179, 0.0
    %v218 = vmax.f32 %v182, 0.0
    %v219 = vmax.f32 %v187, 0.0
    %v220 = vmax.f32 %v190, 0.0
    %v221 = vmax.f32 %v195, 0.0
    %v222 = vmax.f32 %v198, 0.0
    %v223 = vmax.f32 %v203, 0.0
    %v224 = vmax.f32 %v206, 0.0
    %v225 = vpack.c.bf16 %v210, %v209
    %v226 = vpack.c.bf16 %v212, %v211
    %v227 = vpack.c.bf16 %v214, %v213
    %v228 = vpack.c.bf16 %v216, %v215
    %v229 = vpack.c.bf16 %v218, %v217
    %v230 = vpack.c.bf16 %v220, %v219
    %v231 = vpack.c.bf16 %v222, %v221
    %v232 = vpack.c.bf16 %v224, %v223
    %v233 = vlaneseq
    %v234 = vshrl.u32 %v233, 7
    %v235 = vsub.s32 1, %v234
    %v236 = vrot.slane %v60, %v235
    %v245 = vunpack.c.l.b16 %v61
    %v246 = vunpack.c.l.b16 %v62
    %v247 = vunpack.c.l.b16 %v63
    %v248 = vunpack.c.l.b16 %v64
    %v249 = vunpack.c.l.b16 %v65
    %v250 = vunpack.c.l.b16 %v66
    %v251 = vunpack.c.l.b16 %v67
    %v252 = vunpack.c.l.b16 %v68
    %v253 = vpack.c.b16 %v246, %v245
    %v254 = vpack.c.b16 %v248, %v247
    %v255 = vpack.c.b16 %v250, %v249
    %v256 = vpack.c.b16 %v252, %v251
    %vm261 = vcmask 523264
    %v263 = vsel %vm261, %v225, 0
    %v266 = vsel %vm261, %v226, 0
    %v269 = vsel %vm261, %v227, 0
    %v272 = vsel %vm261, %v228, 0
    %v275 = vsel %vm261, %v229, 0
    %v278 = vsel %vm261, %v230, 0
    %v281 = vsel %vm261, %v231, 0
    %v284 = vsel %vm261, %v232, 0
    %286 = vmatprep.subr.bf16.mxu0 0
    %287 = vmatpush1.bf16.msra.mxu0 0
    %288 = vmatprep.subr.bf16.mxu0 0
    %289 = vmatpush1.bf16.msra.mxu0 0
    %290 = vmatprep.subr.bf16.mxu0 0
    %291 = vmatpush1.bf16.msra.mxu0 0
    %292 = vmatprep.subr.bf16.mxu0 0
    %293 = vmatpush1.bf16.msra.mxu0 0
    %294 = vmatprep.subr.bf16.mxu0 0
    %295 = vmatpush1.bf16.msra.mxu0 %v256
    %296 = vmatprep.subr.bf16.mxu0 0
    %297 = vmatpush1.bf16.msra.mxu0 %v255
    %298 = vmatprep.subr.bf16.mxu0 0
    %299 = vmatpush1.bf16.msra.mxu0 %v254
    %300 = vmatprep.subr.bf16.mxu0 0
    %301 = vmatpush1.bf16.msra.mxu0 %v253
    %302 = vmatprep.subr.bf16.mxu0 0
    %303 = vmatpush2.bf16.msra.mxu0 0
    %304 = vmatprep.subr.bf16.mxu0 0
    %305 = vmatpush2.bf16.msra.mxu0 0
    %306 = vmatprep.subr.bf16.mxu0 0
    %307 = vmatpush2.bf16.msra.mxu0 0
    %308 = vmatprep.subr.bf16.mxu0 0
    %309 = vmatpush2.bf16.msra.mxu0 0
    %310 = vmatprep.subr.bf16.mxu0 0
    %311 = vmatpush2.bf16.msra.mxu0 0
    %312 = vmatprep.subr.bf16.mxu0 0
    %313 = vmatpush2.bf16.msra.mxu0 0
    %314 = vmatprep.subr.bf16.mxu0 0
    %315 = vmatpush2.bf16.msra.mxu0 0
    %316 = vmatprep.subr.bf16.mxu0 0
    %317 = vmatpush2.bf16.msra.mxu0 0
    %318 = vmatprep.mubr.bf16.mxu0 0
    %319 = vmatmul.mubr.bf16.gmra.mxu0 %v263
    %v320 = vpop.f32.mrf.mxu0
    %v321 = vadd.f32 %v236, %v320
    %v322 = vpop.f32.mrf.mxu0
    %v323 = vpop.f32.mrf.mxu0
    %v324 = vadd.f32 %v236, %v323
    %v325 = vpop.f32.mrf.mxu0
    %326 = vmatprep.mubr.bf16.mxu0 0
    %327 = vmatmul.mubr.bf16.gmra.mxu0 %v266
    %v328 = vpop.f32.mrf.mxu0
    %v329 = vadd.f32 %v236, %v328
    %v330 = vpop.f32.mrf.mxu0
    %v331 = vpop.f32.mrf.mxu0
    %v332 = vadd.f32 %v236, %v331
    %v333 = vpop.f32.mrf.mxu0
    %334 = vmatprep.mubr.bf16.mxu0 0
    %335 = vmatmul.mubr.bf16.gmra.mxu0 %v269
    %v336 = vpop.f32.mrf.mxu0
    %v337 = vadd.f32 %v236, %v336
    %v338 = vpop.f32.mrf.mxu0
    %v339 = vpop.f32.mrf.mxu0
    %v340 = vadd.f32 %v236, %v339
    %v341 = vpop.f32.mrf.mxu0
    %342 = vmatprep.mubr.bf16.mxu0 0
    %343 = vmatmul.mubr.bf16.gmra.mxu0 %v272
    %v344 = vpop.f32.mrf.mxu0
    %v345 = vadd.f32 %v236, %v344
    %v346 = vpop.f32.mrf.mxu0
    %v347 = vpop.f32.mrf.mxu0
    %v348 = vadd.f32 %v236, %v347
    %v349 = vpop.f32.mrf.mxu0
    %350 = vmatprep.mubr.bf16.mxu0 0
    %351 = vmatmul.mubr.bf16.gmra.mxu0 %v275
    %v352 = vpop.f32.mrf.mxu0
    %v353 = vadd.f32 %v236, %v352
    %v354 = vpop.f32.mrf.mxu0
    %v355 = vpop.f32.mrf.mxu0
    %v356 = vadd.f32 %v236, %v355
    %v357 = vpop.f32.mrf.mxu0
    %358 = vmatprep.mubr.bf16.mxu0 0
    %359 = vmatmul.mubr.bf16.gmra.mxu0 %v278
    %v360 = vpop.f32.mrf.mxu0
    %v361 = vadd.f32 %v236, %v360
    %v362 = vpop.f32.mrf.mxu0
    %v363 = vpop.f32.mrf.mxu0
    %v364 = vadd.f32 %v236, %v363
    %v365 = vpop.f32.mrf.mxu0
    %366 = vmatprep.mubr.bf16.mxu0 0
    %367 = vmatmul.mubr.bf16.gmra.mxu0 %v281
    %v368 = vpop.f32.mrf.mxu0
    %v369 = vadd.f32 %v236, %v368
    %v370 = vpop.f32.mrf.mxu0
    %v371 = vpop.f32.mrf.mxu0
    %v372 = vadd.f32 %v236, %v371
    %v373 = vpop.f32.mrf.mxu0
    %374 = vmatprep.mubr.bf16.mxu0 0
    %375 = vmatmul.mubr.bf16.gmra.mxu0 %v284
    %v376 = vpop.f32.mrf.mxu0
    %v377 = vadd.f32 %v236, %v376
    %v378 = vpop.f32.mrf.mxu0
    %v379 = vpop.f32.mrf.mxu0
    %v380 = vadd.f32 %v236, %v379
    %v381 = vpop.f32.mrf.mxu0
    %382 = vdwg.mxu0
    %v383 = vld [vmem:[#allocation5 + $0x68] sm:$0xf]
    %v384 = vld [vmem:[#allocation5 + $0x6c] sm:$0xf]
    %v385 = vld [vmem:[#allocation5 + $0x70] sm:$0xf]
    %v386 = vld [vmem:[#allocation5 + $0x74] sm:$0xf]
    %v387 = vmul.f32 %v321, %v321
    %v388 = vmul.f32 %v324, %v324
    %v389 = vmul.f32 %v329, %v329
    %v390 = vmul.f32 %v332, %v332
    %v391 = vmul.f32 %v337, %v337
    %v392 = vmul.f32 %v340, %v340
    %v393 = vmul.f32 %v345, %v345
    %v394 = vmul.f32 %v348, %v348
    %v395 = vmul.f32 %v353, %v353
    %v396 = vmul.f32 %v356, %v356
    %v397 = vmul.f32 %v361, %v361
    %v398 = vmul.f32 %v364, %v364
    %v399 = vmul.f32 %v369, %v369
    %v400 = vmul.f32 %v372, %v372
    %v401 = vmul.f32 %v377, %v377
    %v402 = vmul.f32 %v380, %v380
    %v403 = vpack.c.bf16 %v388, %v387
    %v404 = vpack.c.bf16 %v390, %v389
    %v405 = vpack.c.bf16 %v392, %v391
    %v406 = vpack.c.bf16 %v394, %v393
    %v407 = vpack.c.bf16 %v396, %v395
    %v408 = vpack.c.bf16 %v398, %v397
    %v409 = vpack.c.bf16 %v400, %v399
    %v410 = vpack.c.bf16 %v402, %v401
    %v415 = vunpack.c.l.b16 %v383
    %v416 = vunpack.c.l.b16 %v384
    %v417 = vunpack.c.l.b16 %v385
    %v418 = vunpack.c.l.b16 %v386
    %v419 = vpack.c.b16 %v416, %v415
    %v420 = vpack.c.b16 %v418, %v417
    %vm423 = vcmask 261120
    %v425 = vsel %vm423, %v403, 0
    %v428 = vsel %vm423, %v404, 0
    %v431 = vsel %vm423, %v405, 0
    %v434 = vsel %vm423, %v406, 0
    %v437 = vsel %vm423, %v407, 0
    %v440 = vsel %vm423, %v408, 0
    %v443 = vsel %vm423, %v409, 0
    %v446 = vsel %vm423, %v410, 0
    %448 = vmatprep.subr.bf16.mxu0 0
    %449 = vmatpush1.bf16.msra.mxu0 0
    %450 = vmatprep.subr.bf16.mxu0 0
    %451 = vmatpush1.bf16.msra.mxu0 0
    %452 = vmatprep.subr.bf16.mxu0 0
    %453 = vmatpush1.bf16.msra.mxu0 0
    %454 = vmatprep.subr.bf16.mxu0 0
    %455 = vmatpush1.bf16.msra.mxu0 0
    %456 = vmatprep.subr.bf16.mxu0 0
    %457 = vmatpush1.bf16.msra.mxu0 0
    %458 = vmatprep.subr.bf16.mxu0 0
    %459 = vmatpush1.bf16.msra.mxu0 0
    %460 = vmatprep.subr.bf16.mxu0 0
    %461 = vmatpush1.bf16.msra.mxu0 %v420
    %462 = vmatprep.subr.bf16.mxu0 0
    %463 = vmatpush1.bf16.msra.mxu0 %v419
    %464 = vmatprep.subr.bf16.mxu0 0
    %465 = vmatpush2.bf16.msra.mxu0 0
    %466 = vmatprep.subr.bf16.mxu0 0
    %467 = vmatpush2.bf16.msra.mxu0 0
    %468 = vmatprep.subr.bf16.mxu0 0
    %469 = vmatpush2.bf16.msra.mxu0 0
    %470 = vmatprep.subr.bf16.mxu0 0
    %471 = vmatpush2.bf16.msra.mxu0 0
    %472 = vmatprep.subr.bf16.mxu0 0
    %473 = vmatpush2.bf16.msra.mxu0 0
    %474 = vmatprep.subr.bf16.mxu0 0
    %475 = vmatpush2.bf16.msra.mxu0 0
    %476 = vmatprep.subr.bf16.mxu0 0
    %477 = vmatpush2.bf16.msra.mxu0 0
    %478 = vmatprep.subr.bf16.mxu0 0
    %479 = vmatpush2.bf16.msra.mxu0 0
    %480 = vmatprep.mubr.bf16.mxu0 0
    %481 = vmatmul.mubr.bf16.gmra.mxu0 %v425
    %v482 = vpop.f32.mrf.mxu0
    %v483 = vadd.f32 1e-08, %v482
    %v484 = vpop.f32.mrf.mxu0
    %v485 = vpop.f32.mrf.mxu0
    %v486 = vadd.f32 1e-08, %v485
    %v487 = vpop.f32.mrf.mxu0
    %488 = vmatprep.mubr.bf16.mxu0 0
    %489 = vmatmul.mubr.bf16.gmra.mxu0 %v428
    %v490 = vpop.f32.mrf.mxu0
    %v491 = vadd.f32 1e-08, %v490
    %v492 = vpop.f32.mrf.mxu0
    %v493 = vpop.f32.mrf.mxu0
    %v494 = vadd.f32 1e-08, %v493
    %v495 = vpop.f32.mrf.mxu0
    %496 = vmatprep.mubr.bf16.mxu0 0
    %497 = vmatmul.mubr.bf16.gmra.mxu0 %v431
    %v498 = vpop.f32.mrf.mxu0
    %v499 = vadd.f32 1e-08, %v498
    %v500 = vpop.f32.mrf.mxu0
    %v501 = vpop.f32.mrf.mxu0
    %v502 = vadd.f32 1e-08, %v501
    %v503 = vpop.f32.mrf.mxu0
    %504 = vmatprep.mubr.bf16.mxu0 0
    %505 = vmatmul.mubr.bf16.gmra.mxu0 %v434
    %v506 = vpop.f32.mrf.mxu0
    %v507 = vadd.f32 1e-08, %v506
    %v508 = vpop.f32.mrf.mxu0
    %v509 = vpop.f32.mrf.mxu0
    %v510 = vadd.f32 1e-08, %v509
    %v511 = vpop.f32.mrf.mxu0
    %512 = vmatprep.mubr.bf16.mxu0 0
    %513 = vmatmul.mubr.bf16.gmra.mxu0 %v437
    %v514 = vpop.f32.mrf.mxu0
    %v515 = vadd.f32 1e-08, %v514
    %v516 = vpop.f32.mrf.mxu0
    %v517 = vpop.f32.mrf.mxu0
    %v518 = vadd.f32 1e-08, %v517
    %v519 = vpop.f32.mrf.mxu0
    %520 = vmatprep.mubr.bf16.mxu0 0
    %521 = vmatmul.mubr.bf16.gmra.mxu0 %v440
    %v522 = vpop.f32.mrf.mxu0
    %v523 = vadd.f32 1e-08, %v522
    %v524 = vpop.f32.mrf.mxu0
    %v525 = vpop.f32.mrf.mxu0
    %v526 = vadd.f32 1e-08, %v525
    %v527 = vpop.f32.mrf.mxu0
    %528 = vmatprep.mubr.bf16.mxu0 0
    %529 = vmatmul.mubr.bf16.gmra.mxu0 %v443
    %v530 = vpop.f32.mrf.mxu0
    %v531 = vadd.f32 1e-08, %v530
    %v532 = vpop.f32.mrf.mxu0
    %v533 = vpop.f32.mrf.mxu0
    %v534 = vadd.f32 1e-08, %v533
    %v535 = vpop.f32.mrf.mxu0
    %536 = vmatprep.mubr.bf16.mxu0 0
    %537 = vmatmul.mubr.bf16.gmra.mxu0 %v446
    %v538 = vpop.f32.mrf.mxu0
    %v539 = vadd.f32 1e-08, %v538
    %v540 = vpop.f32.mrf.mxu0
    %v541 = vpop.f32.mrf.mxu0
    %v542 = vadd.f32 1e-08, %v541
    %v543 = vpop.f32.mrf.mxu0
    %544 = vdwg.mxu0
    %v545 = vrsqrt.pop %v483
    %v546 = vrsqrt.pop %v486
    %v547 = vrsqrt.pop %v491
    %v548 = vrsqrt.pop %v494
    %v549 = vrsqrt.pop %v499
    %v550 = vrsqrt.pop %v502
    %v551 = vrsqrt.pop %v507
    %v552 = vrsqrt.pop %v510
    %v553 = vrsqrt.pop %v515
    %v554 = vrsqrt.pop %v518
    %v555 = vrsqrt.pop %v523
    %v556 = vrsqrt.pop %v526
    %v557 = vrsqrt.pop %v531
    %v558 = vrsqrt.pop %v534
    %v559 = vrsqrt.pop %v539
    %v560 = vrsqrt.pop %v542
    %v561 = vmul.f32 %v545, 2.828427
    %v562 = vmul.f32 %v546, 2.828427
    %v563 = vmul.f32 %v547, 2.828427
    %v564 = vmul.f32 %v548, 2.828427
    %v565 = vmul.f32 %v549, 2.828427
    %v566 = vmul.f32 %v550, 2.828427
    %v567 = vmul.f32 %v551, 2.828427
    %v568 = vmul.f32 %v552, 2.828427
    %v569 = vmul.f32 %v553, 2.828427
    %v570 = vmul.f32 %v554, 2.828427
    %v571 = vmul.f32 %v555, 2.828427
    %v572 = vmul.f32 %v556, 2.828427
    %v573 = vmul.f32 %v557, 2.828427
    %v574 = vmul.f32 %v558, 2.828427
    %v575 = vmul.f32 %v559, 2.828427
    %v576 = vmul.f32 %v560, 2.828427
    %v577 = vmul.f32 %v321, %v561
    %v578 = vmul.f32 %v324, %v562
    %v579 = vmul.f32 %v329, %v563
    %v580 = vmul.f32 %v332, %v564
    %v581 = vmul.f32 %v337, %v565
    %v582 = vmul.f32 %v340, %v566
    %v583 = vmul.f32 %v345, %v567
    %v584 = vmul.f32 %v348, %v568
    %v585 = vmul.f32 %v353, %v569
    %v586 = vmul.f32 %v356, %v570
    %v587 = vmul.f32 %v361, %v571
    %v588 = vmul.f32 %v364, %v572
    %v589 = vmul.f32 %v369, %v573
    %v590 = vmul.f32 %v372, %v574
    %v591 = vmul.f32 %v377, %v575
    %v592 = vmul.f32 %v380, %v576
    %v593 = vmul.f32 %v41, 0.31622776
    %v594 = vmul.f32 %v42, 0.31622776
    %v595 = vmul.f32 %v43, 0.31622776
    %v596 = vmul.f32 %v44, 0.31622776
    %v597 = vmul.f32 %v45, 0.31622776
    %v598 = vmul.f32 %v46, 0.31622776
    %v599 = vmul.f32 %v47, 0.31622776
    %v600 = vmul.f32 %v48, 0.31622776
    %v601 = vmul.f32 %v49, 0.31622776
    %v602 = vmul.f32 %v50, 0.31622776
    %v603 = vmul.f32 %v51, 0.31622776
    %v604 = vmul.f32 %v52, 0.31622776
    %v605 = vmul.f32 %v53, 0.31622776
    %v606 = vmul.f32 %v54, 0.31622776
    %v607 = vmul.f32 %v55, 0.31622776
    %v608 = vmul.f32 %v56, 0.31622776
    %625 = vrot.lane.b32.xlu0 %v593, 96
    %v626 = vpop.permute.xlu0 %625
    %627 = vrot.lane.b32.xlu0 %v594, 96
    %v628 = vpop.permute.xlu0 %627
    %629 = vrot.lane.b32.xlu0 %v595, 96
    %v630 = vpop.permute.xlu0 %629
    %631 = vrot.lane.b32.xlu0 %v596, 96
    %v632 = vpop.permute.xlu0 %631
    %633 = vrot.lane.b32.xlu0 %v597, 96
    %v634 = vpop.permute.xlu0 %633
    %635 = vrot.lane.b32.xlu0 %v598, 96
    %v636 = vpop.permute.xlu0 %635
    %637 = vrot.lane.b32.xlu0 %v599, 96
    %v638 = vpop.permute.xlu0 %637
    %639 = vrot.lane.b32.xlu0 %v600, 96
    %v640 = vpop.permute.xlu0 %639
    %641 = vrot.lane.b32.xlu0 %v601, 96
    %v642 = vpop.permute.xlu0 %641
    %643 = vrot.lane.b32.xlu0 %v602, 96
    %v644 = vpop.permute.xlu0 %643
    %645 = vrot.lane.b32.xlu0 %v603, 96
    %v646 = vpop.permute.xlu0 %645
    %647 = vrot.lane.b32.xlu0 %v604, 96
    %v648 = vpop.permute.xlu0 %647
    %649 = vrot.lane.b32.xlu0 %v605, 96
    %v650 = vpop.permute.xlu0 %649
    %651 = vrot.lane.b32.xlu0 %v606, 96
    %v652 = vpop.permute.xlu0 %651
    %653 = vrot.lane.b32.xlu0 %v607, 96
    %v654 = vpop.permute.xlu0 %653
    %655 = vrot.lane.b32.xlu0 %v608, 96
    %v656 = vpop.permute.xlu0 %655
    %v673 = vadd.f32 %v577, %v626
    %v674 = vadd.f32 %v578, %v628
    %v675 = vadd.f32 %v579, %v630
    %v676 = vadd.f32 %v580, %v632
    %v677 = vadd.f32 %v581, %v634
    %v678 = vadd.f32 %v582, %v636
    %v679 = vadd.f32 %v583, %v638
    %v680 = vadd.f32 %v584, %v640
    %v681 = vadd.f32 %v585, %v642
    %v682 = vadd.f32 %v586, %v644
    %v683 = vadd.f32 %v587, %v646
    %v684 = vadd.f32 %v588, %v648
    %v685 = vadd.f32 %v589, %v650
    %v686 = vadd.f32 %v590, %v652
    %v687 = vadd.f32 %v591, %v654
    %v688 = vadd.f32 %v592, %v656
    %v689 = vld [vmem:[#allocation5 + $0x28] sm:$0xf]
    %v690 = vld [vmem:[#allocation5 + $0x2c] sm:$0xf]
    %v691 = vld [vmem:[#allocation5 + $0x30] sm:$0xf]
    %v692 = vld [vmem:[#allocation5 + $0x34] sm:$0xf]
    %v693 = vld [vmem:[#allocation5 + $0x78] sm:$0x2]
    %v694 = vunpack.c.l.bf16 %v693
    %v695 = vpack.c.bf16 %v674, %v673
    %v696 = vpack.c.bf16 %v676, %v675
    %v697 = vpack.c.bf16 %v678, %v677
    %v698 = vpack.c.bf16 %v680, %v679
    %v699 = vpack.c.bf16 %v682, %v681
    %v700 = vpack.c.bf16 %v684, %v683
    %v701 = vpack.c.bf16 %v686, %v685
    %v702 = vpack.c.bf16 %v688, %v687
    %v703 = vlaneseq
    %v704 = vshrl.u32 %v703, 7
    %v705 = vsub.s32 2, %v704
    %v706 = vrot.slane %v694, %v705
    %v711 = vunpack.c.l.b16 %v689
    %v712 = vunpack.c.l.b16 %v690
    %v713 = vunpack.c.l.b16 %v691
    %v714 = vunpack.c.l.b16 %v692
    %v715 = vpack.c.b16 %v712, %v711
    %v716 = vpack.c.b16 %v714, %v713
    %v720 = vsel %vm423, %v695, 0
    %v723 = vsel %vm423, %v696, 0
    %v726 = vsel %vm423, %v697, 0
    %v729 = vsel %vm423, %v698, 0
    %v732 = vsel %vm423, %v699, 0
    %v735 = vsel %vm423, %v700, 0
    %v738 = vsel %vm423, %v701, 0
    %v741 = vsel %vm423, %v702, 0
    %743 = vmatprep.subr.bf16.mxu0 0
    %744 = vmatpush1.bf16.msra.mxu0 0
    %745 = vmatprep.subr.bf16.mxu0 0
    %746 = vmatpush1.bf16.msra.mxu0 0
    %747 = vmatprep.subr.bf16.mxu0 0
    %748 = vmatpush1.bf16.msra.mxu0 0
    %749 = vmatprep.subr.bf16.mxu0 0
    %750 = vmatpush1.bf16.msra.mxu0 0
    %751 = vmatprep.subr.bf16.mxu0 0
    %752 = vmatpush1.bf16.msra.mxu0 0
    %753 = vmatprep.subr.bf16.mxu0 0
    %754 = vmatpush1.bf16.msra.mxu0 0
    %755 = vmatprep.subr.bf16.mxu0 0
    %756 = vmatpush1.bf16.msra.mxu0 %v716
    %757 = vmatprep.subr.bf16.mxu0 0
    %758 = vmatpush1.bf16.msra.mxu0 %v715
    %759 = vmatprep.subr.bf16.mxu0 0
    %760 = vmatpush2.bf16.msra.mxu0 0
    %761 = vmatprep.subr.bf16.mxu0 0
    %762 = vmatpush2.bf16.msra.mxu0 0
    %763 = vmatprep.subr.bf16.mxu0 0
    %764 = vmatpush2.bf16.msra.mxu0 0
    %765 = vmatprep.subr.bf16.mxu0 0
    %766 = vmatpush2.bf16.msra.mxu0 0
    %767 = vmatprep.subr.bf16.mxu0 0
    %768 = vmatpush2.bf16.msra.mxu0 0
    %769 = vmatprep.subr.bf16.mxu0 0
    %770 = vmatpush2.bf16.msra.mxu0 0
    %771 = vmatprep.subr.bf16.mxu0 0
    %772 = vmatpush2.bf16.msra.mxu0 0
    %773 = vmatprep.subr.bf16.mxu0 0
    %774 = vmatpush2.bf16.msra.mxu0 0
    %775 = vmatprep.mubr.bf16.mxu0 0
    %776 = vmatmul.mubr.bf16.gmra.mxu0 %v720
    %v777 = vpop.f32.mrf.mxu0
    %v778 = vadd.f32 %v706, %v777
    %v779 = vpop.f32.mrf.mxu0
    %v780 = vpop.f32.mrf.mxu0
    %v781 = vadd.f32 %v706, %v780
    %v782 = vpop.f32.mrf.mxu0
    %783 = vmatprep.mubr.bf16.mxu0 0
    %784 = vmatmul.mubr.bf16.gmra.mxu0 %v723
    %v785 = vpop.f32.mrf.mxu0
    %v786 = vadd.f32 %v706, %v785
    %v787 = vpop.f32.mrf.mxu0
    %v788 = vpop.f32.mrf.mxu0
    %v789 = vadd.f32 %v706, %v788
    %v790 = vpop.f32.mrf.mxu0
    %791 = vmatprep.mubr.bf16.mxu0 0
    %792 = vmatmul.mubr.bf16.gmra.mxu0 %v726
    %v793 = vpop.f32.mrf.mxu0
    %v794 = vadd.f32 %v706, %v793
    %v795 = vpop.f32.mrf.mxu0
    %v796 = vpop.f32.mrf.mxu0
    %v797 = vadd.f32 %v706, %v796
    %v798 = vpop.f32.mrf.mxu0
    %799 = vmatprep.mubr.bf16.mxu0 0
    %800 = vmatmul.mubr.bf16.gmra.mxu0 %v729
    %v801 = vpop.f32.mrf.mxu0
    %v802 = vadd.f32 %v706, %v801
    %v803 = vpop.f32.mrf.mxu0
    %v804 = vpop.f32.mrf.mxu0
    %v805 = vadd.f32 %v706, %v804
    %v806 = vpop.f32.mrf.mxu0
    %807 = vmatprep.mubr.bf16.mxu0 0
    %808 = vmatmul.mubr.bf16.gmra.mxu0 %v732
    %v809 = vpop.f32.mrf.mxu0
    %v810 = vadd.f32 %v706, %v809
    %v811 = vpop.f32.mrf.mxu0
    %v812 = vpop.f32.mrf.mxu0
    %v813 = vadd.f32 %v706, %v812
    %v814 = vpop.f32.mrf.mxu0
    %815 = vmatprep.mubr.bf16.mxu0 0
    %816 = vmatmul.mubr.bf16.gmra.mxu0 %v735
    %v817 = vpop.f32.mrf.mxu0
    %v818 = vadd.f32 %v706, %v817
    %v819 = vpop.f32.mrf.mxu0
    %v820 = vpop.f32.mrf.mxu0
    %v821 = vadd.f32 %v706, %v820
    %v822 = vpop.f32.mrf.mxu0
    %823 = vmatprep.mubr.bf16.mxu0 0
    %824 = vmatmul.mubr.bf16.gmra.mxu0 %v738
    %v825 = vpop.f32.mrf.mxu0
    %v826 = vadd.f32 %v706, %v825
    %v827 = vpop.f32.mrf.mxu0
    %v828 = vpop.f32.mrf.mxu0
    %v829 = vadd.f32 %v706, %v828
    %v830 = vpop.f32.mrf.mxu0
    %831 = vmatprep.mubr.bf16.mxu0 0
    %832 = vmatmul.mubr.bf16.gmra.mxu0 %v741
    %v833 = vpop.f32.mrf.mxu0
    %v834 = vadd.f32 %v706, %v833
    %v835 = vpop.f32.mrf.mxu0
    %v836 = vpop.f32.mrf.mxu0
    %v837 = vadd.f32 %v706, %v836
    %v838 = vpop.f32.mrf.mxu0
    %839 = vdwg.mxu0
    %v840 = vmax.f32 %v778, 0.0
    %v841 = vmax.f32 %v781, 0.0
    %v842 = vmax.f32 %v786, 0.0
    %v843 = vmax.f32 %v789, 0.0
    %v844 = vmax.f32 %v794, 0.0
    %v845 = vmax.f32 %v797, 0.0
    %v846 = vmax.f32 %v802, 0.0
    %v847 = vmax.f32 %v805, 0.0
    %v848 = vmax.f32 %v810, 0.0
    %v849 = vmax.f32 %v813, 0.0
    %v850 = vmax.f32 %v818, 0.0
    %v851 = vmax.f32 %v821, 0.0
    %v852 = vmax.f32 %v826, 0.0
    %v853 = vmax.f32 %v829, 0.0
    %v854 = vmax.f32 %v834, 0.0
    %v855 = vmax.f32 %v837, 0.0
    %v856 = vld [vmem:[#allocation5 + $0x38] sm:$0xf]
    %v857 = vld [vmem:[#allocation5 + $0x3c] sm:$0xf]
    %v858 = vld [vmem:[#allocation5 + $0x40] sm:$0xf]
    %v859 = vld [vmem:[#allocation5 + $0x44] sm:$0xf]
    %v860 = vpack.c.bf16 %v841, %v840
    %v861 = vpack.c.bf16 %v843, %v842
    %v862 = vpack.c.bf16 %v845, %v844
    %v863 = vpack.c.bf16 %v847, %v846
    %v864 = vpack.c.bf16 %v849, %v848
    %v865 = vpack.c.bf16 %v851, %v850
    %v866 = vpack.c.bf16 %v853, %v852
    %v867 = vpack.c.bf16 %v855, %v854
    %v868 = vlaneseq
    %v869 = vshrl.u32 %v868, 7
    %v870 = vsub.s32 3, %v869
    %v871 = vrot.slane %v694, %v870
    %v876 = vunpack.c.l.b16 %v856
    %v877 = vunpack.c.l.b16 %v857
    %v878 = vunpack.c.l.b16 %v858
    %v879 = vunpack.c.l.b16 %v859
    %v880 = vpack.c.b16 %v877, %v876
    %v881 = vpack.c.b16 %v879, %v878
    %v885 = vsel %vm423, %v860, 0
    %v888 = vsel %vm423, %v861, 0
    %v891 = vsel %vm423, %v862, 0
    %v894 = vsel %vm423, %v863, 0
    %v897 = vsel %vm423, %v864, 0
    %v900 = vsel %vm423, %v865, 0
    %v903 = vsel %vm423, %v866, 0
    %v906 = vsel %vm423, %v867, 0
    %908 = vmatprep.subr.bf16.mxu0 0
    %909 = vmatpush1.bf16.msra.mxu0 0
    %910 = vmatprep.subr.bf16.mxu0 0
    %911 = vmatpush1.bf16.msra.mxu0 0
    %912 = vmatprep.subr.bf16.mxu0 0
    %913 = vmatpush1.bf16.msra.mxu0 0
    %914 = vmatprep.subr.bf16.mxu0 0
    %915 = vmatpush1.bf16.msra.mxu0 0
    %916 = vmatprep.subr.bf16.mxu0 0
    %917 = vmatpush1.bf16.msra.mxu0 0
    %918 = vmatprep.subr.bf16.mxu0 0
    %919 = vmatpush1.bf16.msra.mxu0 0
    %920 = vmatprep.subr.bf16.mxu0 0
    %921 = vmatpush1.bf16.msra.mxu0 %v881
    %922 = vmatprep.subr.bf16.mxu0 0
    %923 = vmatpush1.bf16.msra.mxu0 %v880
    %924 = vmatprep.subr.bf16.mxu0 0
    %925 = vmatpush2.bf16.msra.mxu0 0
    %926 = vmatprep.subr.bf16.mxu0 0
    %927 = vmatpush2.bf16.msra.mxu0 0
    %928 = vmatprep.subr.bf16.mxu0 0
    %929 = vmatpush2.bf16.msra.mxu0 0
    %930 = vmatprep.subr.bf16.mxu0 0
    %931 = vmatpush2.bf16.msra.mxu0 0
    %932 = vmatprep.subr.bf16.mxu0 0
    %933 = vmatpush2.bf16.msra.mxu0 0
    %934 = vmatprep.subr.bf16.mxu0 0
    %935 = vmatpush2.bf16.msra.mxu0 0
    %936 = vmatprep.subr.bf16.mxu0 0
    %937 = vmatpush2.bf16.msra.mxu0 0
    %938 = vmatprep.subr.bf16.mxu0 0
    %939 = vmatpush2.bf16.msra.mxu0 0
    %940 = vmatprep.mubr.bf16.mxu0 0
    %941 = vmatmul.mubr.bf16.gmra.mxu0 %v885
    %v942 = vpop.f32.mrf.mxu0
    %v943 = vadd.f32 %v871, %v942
    %v944 = vpop.f32.mrf.mxu0
    %v945 = vpop.f32.mrf.mxu0
    %v946 = vadd.f32 %v871, %v945
    %v947 = vpop.f32.mrf.mxu0
    %948 = vmatprep.mubr.bf16.mxu0 0
    %949 = vmatmul.mubr.bf16.gmra.mxu0 %v888
    %v950 = vpop.f32.mrf.mxu0
    %v951 = vadd.f32 %v871, %v950
    %v952 = vpop.f32.mrf.mxu0
    %v953 = vpop.f32.mrf.mxu0
    %v954 = vadd.f32 %v871, %v953
    %v955 = vpop.f32.mrf.mxu0
    %956 = vmatprep.mubr.bf16.mxu0 0
    %957 = vmatmul.mubr.bf16.gmra.mxu0 %v891
    %v958 = vpop.f32.mrf.mxu0
    %v959 = vadd.f32 %v871, %v958
    %v960 = vpop.f32.mrf.mxu0
    %v961 = vpop.f32.mrf.mxu0
    %v962 = vadd.f32 %v871, %v961
    %v963 = vpop.f32.mrf.mxu0
    %964 = vmatprep.mubr.bf16.mxu0 0
    %965 = vmatmul.mubr.bf16.gmra.mxu0 %v894
    %v966 = vpop.f32.mrf.mxu0
    %v967 = vadd.f32 %v871, %v966
    %v968 = vpop.f32.mrf.mxu0
    %v969 = vpop.f32.mrf.mxu0
    %v970 = vadd.f32 %v871, %v969
    %v971 = vpop.f32.mrf.mxu0
    %972 = vmatprep.mubr.bf16.mxu0 0
    %973 = vmatmul.mubr.bf16.gmra.mxu0 %v897
    %v974 = vpop.f32.mrf.mxu0
    %v975 = vadd.f32 %v871, %v974
    %v976 = vpop.f32.mrf.mxu0
    %v977 = vpop.f32.mrf.mxu0
    %v978 = vadd.f32 %v871, %v977
    %v979 = vpop.f32.mrf.mxu0
    %980 = vmatprep.mubr.bf16.mxu0 0
    %981 = vmatmul.mubr.bf16.gmra.mxu0 %v900
    %v982 = vpop.f32.mrf.mxu0
    %v983 = vadd.f32 %v871, %v982
    %v984 = vpop.f32.mrf.mxu0
    %v985 = vpop.f32.mrf.mxu0
    %v986 = vadd.f32 %v871, %v985
    %v987 = vpop.f32.mrf.mxu0
    %988 = vmatprep.mubr.bf16.mxu0 0
    %989 = vmatmul.mubr.bf16.gmra.mxu0 %v903
    %v990 = vpop.f32.mrf.mxu0
    %v991 = vadd.f32 %v871, %v990
    %v992 = vpop.f32.mrf.mxu0
    %v993 = vpop.f32.mrf.mxu0
    %v994 = vadd.f32 %v871, %v993
    %v995 = vpop.f32.mrf.mxu0
    %996 = vmatprep.mubr.bf16.mxu0 0
    %997 = vmatmul.mubr.bf16.gmra.mxu0 %v906
    %v998 = vpop.f32.mrf.mxu0
    %v999 = vadd.f32 %v871, %v998
    %v1000 = vpop.f32.mrf.mxu0
    %v1001 = vpop.f32.mrf.mxu0
    %v1002 = vadd.f32 %v871, %v1001
    %v1003 = vpop.f32.mrf.mxu0
    %1004 = vdwg.mxu0
    %v1005 = vmax.f32 %v943, 0.0
    %v1006 = vmax.f32 %v946, 0.0
    %v1007 = vmax.f32 %v951, 0.0
    %v1008 = vmax.f32 %v954, 0.0
    %v1009 = vmax.f32 %v959, 0.0
    %v1010 = vmax.f32 %v962, 0.0
    %v1011 = vmax.f32 %v967, 0.0
    %v1012 = vmax.f32 %v970, 0.0
    %v1013 = vmax.f32 %v975, 0.0
    %v1014 = vmax.f32 %v978, 0.0
    %v1015 = vmax.f32 %v983, 0.0
    %v1016 = vmax.f32 %v986, 0.0
    %v1017 = vmax.f32 %v991, 0.0
    %v1018 = vmax.f32 %v994, 0.0
    %v1019 = vmax.f32 %v999, 0.0
    %v1020 = vmax.f32 %v1002, 0.0
    %v1021 = vld [vmem:[#allocation5 + $0x48] sm:$0xf]
    %v1022 = vld [vmem:[#allocation5 + $0x4c] sm:$0xf]
    %v1023 = vld [vmem:[#allocation5 + $0x50] sm:$0xf]
    %v1024 = vld [vmem:[#allocation5 + $0x54] sm:$0xf]
    %v1025 = vld [vmem:[#allocation5 + $0x78] sm:$0x4]
    %v1026 = vunpack.c.l.bf16 %v1025
    %v1027 = vpack.c.bf16 %v1006, %v1005
    %v1028 = vpack.c.bf16 %v1008, %v1007
    %v1029 = vpack.c.bf16 %v1010, %v1009
    %v1030 = vpack.c.bf16 %v1012, %v1011
    %v1031 = vpack.c.bf16 %v1014, %v1013
    %v1032 = vpack.c.bf16 %v1016, %v1015
    %v1033 = vpack.c.bf16 %v1018, %v1017
    %v1034 = vpack.c.bf16 %v1020, %v1019
    %v1035 = vlaneseq
    %v1036 = vshrl.u32 %v1035, 7
    %v1037 = vsub.s32 4, %v1036
    %v1038 = vrot.slane %v1026, %v1037
    %v1043 = vunpack.c.l.b16 %v1021
    %v1044 = vunpack.c.l.b16 %v1022
    %v1045 = vunpack.c.l.b16 %v1023
    %v1046 = vunpack.c.l.b16 %v1024
    %v1047 = vpack.c.b16 %v1044, %v1043
    %v1048 = vpack.c.b16 %v1046, %v1045
    %v1052 = vsel %vm423, %v1027, 0
    %v1055 = vsel %vm423, %v1028, 0
    %v1058 = vsel %vm423, %v1029, 0
    %v1061 = vsel %vm423, %v1030, 0
    %v1064 = vsel %vm423, %v1031, 0
    %v1067 = vsel %vm423, %v1032, 0
    %v1070 = vsel %vm423, %v1033, 0
    %v1073 = vsel %vm423, %v1034, 0
    %1075 = vmatprep.subr.bf16.mxu0 0
    %1076 = vmatpush1.bf16.msra.mxu0 0
    %1077 = vmatprep.subr.bf16.mxu0 0
    %1078 = vmatpush1.bf16.msra.mxu0 0
    %1079 = vmatprep.subr.bf16.mxu0 0
    %1080 = vmatpush1.bf16.msra.mxu0 0
    %1081 = vmatprep.subr.bf16.mxu0 0
    %1082 = vmatpush1.bf16.msra.mxu0 0
    %1083 = vmatprep.subr.bf16.mxu0 0
    %1084 = vmatpush1.bf16.msra.mxu0 0
    %1085 = vmatprep.subr.bf16.mxu0 0
    %1086 = vmatpush1.bf16.msra.mxu0 0
    %1087 = vmatprep.subr.bf16.mxu0 0
    %1088 = vmatpush1.bf16.msra.mxu0 %v1048
    %1089 = vmatprep.subr.bf16.mxu0 0
    %1090 = vmatpush1.bf16.msra.mxu0 %v1047
    %1091 = vmatprep.subr.bf16.mxu0 0
    %1092 = vmatpush2.bf16.msra.mxu0 0
    %1093 = vmatprep.subr.bf16.mxu0 0
    %1094 = vmatpush2.bf16.msra.mxu0 0
    %1095 = vmatprep.subr.bf16.mxu0 0
    %1096 = vmatpush2.bf16.msra.mxu0 0
    %1097 = vmatprep.subr.bf16.mxu0 0
    %1098 = vmatpush2.bf16.msra.mxu0 0
    %1099 = vmatprep.subr.bf16.mxu0 0
    %1100 = vmatpush2.bf16.msra.mxu0 0
    %1101 = vmatprep.subr.bf16.mxu0 0
    %1102 = vmatpush2.bf16.msra.mxu0 0
    %1103 = vmatprep.subr.bf16.mxu0 0
    %1104 = vmatpush2.bf16.msra.mxu0 0
    %1105 = vmatprep.subr.bf16.mxu0 0
    %1106 = vmatpush2.bf16.msra.mxu0 0
    %1107 = vmatprep.mubr.bf16.mxu0 0
    %1108 = vmatmul.mubr.bf16.gmra.mxu0 %v1052
    %v1109 = vpop.f32.mrf.mxu0
    %v1110 = vadd.f32 %v1038, %v1109
    %v1111 = vpop.f32.mrf.mxu0
    %v1112 = vpop.f32.mrf.mxu0
    %v1113 = vadd.f32 %v1038, %v1112
    %v1114 = vpop.f32.mrf.mxu0
    %1115 = vmatprep.mubr.bf16.mxu0 0
    %1116 = vmatmul.mubr.bf16.gmra.mxu0 %v1055
    %v1117 = vpop.f32.mrf.mxu0
    %v1118 = vadd.f32 %v1038, %v1117
    %v1119 = vpop.f32.mrf.mxu0
    %v1120 = vpop.f32.mrf.mxu0
    %v1121 = vadd.f32 %v1038, %v1120
    %v1122 = vpop.f32.mrf.mxu0
    %1123 = vmatprep.mubr.bf16.mxu0 0
    %1124 = vmatmul.mubr.bf16.gmra.mxu0 %v1058
    %v1125 = vpop.f32.mrf.mxu0
    %v1126 = vadd.f32 %v1038, %v1125
    %v1127 = vpop.f32.mrf.mxu0
    %v1128 = vpop.f32.mrf.mxu0
    %v1129 = vadd.f32 %v1038, %v1128
    %v1130 = vpop.f32.mrf.mxu0
    %1131 = vmatprep.mubr.bf16.mxu0 0
    %1132 = vmatmul.mubr.bf16.gmra.mxu0 %v1061
    %v1133 = vpop.f32.mrf.mxu0
    %v1134 = vadd.f32 %v1038, %v1133
    %v1135 = vpop.f32.mrf.mxu0
    %v1136 = vpop.f32.mrf.mxu0
    %v1137 = vadd.f32 %v1038, %v1136
    %v1138 = vpop.f32.mrf.mxu0
    %1139 = vmatprep.mubr.bf16.mxu0 0
    %1140 = vmatmul.mubr.bf16.gmra.mxu0 %v1064
    %v1141 = vpop.f32.mrf.mxu0
    %v1142 = vadd.f32 %v1038, %v1141
    %v1143 = vpop.f32.mrf.mxu0
    %v1144 = vpop.f32.mrf.mxu0
    %v1145 = vadd.f32 %v1038, %v1144
    %v1146 = vpop.f32.mrf.mxu0
    %1147 = vmatprep.mubr.bf16.mxu0 0
    %1148 = vmatmul.mubr.bf16.gmra.mxu0 %v1067
    %v1149 = vpop.f32.mrf.mxu0
    %v1150 = vadd.f32 %v1038, %v1149
    %v1151 = vpop.f32.mrf.mxu0
    %v1152 = vpop.f32.mrf.mxu0
    %v1153 = vadd.f32 %v1038, %v1152
    %v1154 = vpop.f32.mrf.mxu0
    %1155 = vmatprep.mubr.bf16.mxu0 0
    %1156 = vmatmul.mubr.bf16.gmra.mxu0 %v1070
    %v1157 = vpop.f32.mrf.mxu0
    %v1158 = vadd.f32 %v1038, %v1157
    %v1159 = vpop.f32.mrf.mxu0
    %v1160 = vpop.f32.mrf.mxu0
    %v1161 = vadd.f32 %v1038, %v1160
    %v1162 = vpop.f32.mrf.mxu0
    %1163 = vmatprep.mubr.bf16.mxu0 0
    %1164 = vmatmul.mubr.bf16.gmra.mxu0 %v1073
    %v1165 = vpop.f32.mrf.mxu0
    %v1166 = vadd.f32 %v1038, %v1165
    %v1167 = vpop.f32.mrf.mxu0
    %v1168 = vpop.f32.mrf.mxu0
    %v1169 = vadd.f32 %v1038, %v1168
    %v1170 = vpop.f32.mrf.mxu0
    %1171 = vdwg.mxu0
    %v1172 = vxor.u32 %v1110, 2147483648
    %v1173 = vxor.u32 %v1113, 2147483648
    %v1174 = vxor.u32 %v1118, 2147483648
    %v1175 = vxor.u32 %v1121, 2147483648
    %v1176 = vxor.u32 %v1126, 2147483648
    %v1177 = vxor.u32 %v1129, 2147483648
    %v1178 = vxor.u32 %v1134, 2147483648
    %v1179 = vxor.u32 %v1137, 2147483648
    %v1180 = vxor.u32 %v1142, 2147483648
    %v1181 = vxor.u32 %v1145, 2147483648
    %v1182 = vxor.u32 %v1150, 2147483648
    %v1183 = vxor.u32 %v1153, 2147483648
    %v1184 = vxor.u32 %v1158, 2147483648
    %v1185 = vxor.u32 %v1161, 2147483648
    %v1186 = vxor.u32 %v1166, 2147483648
    %v1187 = vxor.u32 %v1169, 2147483648
    %v1188 = vmul.f32 %v1172, 1.442695
    %v1189 = vpow.pop %v1188
    %v1190 = vmul.f32 %v1173, 1.442695
    %v1191 = vpow.pop %v1190
    %v1192 = vmul.f32 %v1174, 1.442695
    %v1193 = vpow.pop %v1192
    %v1194 = vmul.f32 %v1175, 1.442695
    %v1195 = vpow.pop %v1194
    %v1196 = vmul.f32 %v1176, 1.442695
    %v1197 = vpow.pop %v1196
    %v1198 = vmul.f32 %v1177, 1.442695
    %v1199 = vpow.pop %v1198
    %v1200 = vmul.f32 %v1178, 1.442695
    %v1201 = vpow.pop %v1200
    %v1202 = vmul.f32 %v1179, 1.442695
    %v1203 = vpow.pop %v1202
    %v1204 = vmul.f32 %v1180, 1.442695
    %v1205 = vpow.pop %v1204
    %v1206 = vmul.f32 %v1181, 1.442695
    %v1207 = vpow.pop %v1206
    %v1208 = vmul.f32 %v1182, 1.442695
    %v1209 = vpow.pop %v1208
    %v1210 = vmul.f32 %v1183, 1.442695
    %v1211 = vpow.pop %v1210
    %v1212 = vmul.f32 %v1184, 1.442695
    %v1213 = vpow.pop %v1212
    %v1214 = vmul.f32 %v1185, 1.442695
    %v1215 = vpow.pop %v1214
    %v1216 = vmul.f32 %v1186, 1.442695
    %v1217 = vpow.pop %v1216
    %v1218 = vmul.f32 %v1187, 1.442695
    %v1219 = vpow.pop %v1218
    %v1220 = vadd.f32 %v1189, 1.0
    %v1221 = vadd.f32 %v1191, 1.0
    %v1222 = vadd.f32 %v1193, 1.0
    %v1223 = vadd.f32 %v1195, 1.0
    %v1224 = vadd.f32 %v1197, 1.0
    %v1225 = vadd.f32 %v1199, 1.0
    %v1226 = vadd.f32 %v1201, 1.0
    %v1227 = vadd.f32 %v1203, 1.0
    %v1228 = vadd.f32 %v1205, 1.0
    %v1229 = vadd.f32 %v1207, 1.0
    %v1230 = vadd.f32 %v1209, 1.0
    %v1231 = vadd.f32 %v1211, 1.0
    %v1232 = vadd.f32 %v1213, 1.0
    %v1233 = vadd.f32 %v1215, 1.0
    %v1234 = vadd.f32 %v1217, 1.0
    %v1235 = vadd.f32 %v1219, 1.0
    %v1236 = vrcp.pop %v1220
    %v1237 = vmul.f32 1.0, %v1236
    %v1238 = vrcp.pop %v1221
    %v1239 = vmul.f32 1.0, %v1238
    %v1240 = vrcp.pop %v1222
    %v1241 = vmul.f32 1.0, %v1240
    %v1242 = vrcp.pop %v1223
    %v1243 = vmul.f32 1.0, %v1242
    %v1244 = vrcp.pop %v1224
    %v1245 = vmul.f32 1.0, %v1244
    %v1246 = vrcp.pop %v1225
    %v1247 = vmul.f32 1.0, %v1246
    %v1248 = vrcp.pop %v1226
    %v1249 = vmul.f32 1.0, %v1248
    %v1250 = vrcp.pop %v1227
    %v1251 = vmul.f32 1.0, %v1250
    %v1252 = vrcp.pop %v1228
    %v1253 = vmul.f32 1.0, %v1252
    %v1254 = vrcp.pop %v1229
    %v1255 = vmul.f32 1.0, %v1254
    %v1256 = vrcp.pop %v1230
    %v1257 = vmul.f32 1.0, %v1256
    %v1258 = vrcp.pop %v1231
    %v1259 = vmul.f32 1.0, %v1258
    %v1260 = vrcp.pop %v1232
    %v1261 = vmul.f32 1.0, %v1260
    %v1262 = vrcp.pop %v1233
    %v1263 = vmul.f32 1.0, %v1262
    %v1264 = vrcp.pop %v1234
    %v1265 = vmul.f32 1.0, %v1264
    %v1266 = vrcp.pop %v1235
    %v1267 = vmul.f32 1.0, %v1266
    %v1268 = vld [vmem:[#allocation5 + $0x58] sm:$0x3]
    %v1269 = vpack.c.bf16 %v1239, %v1237
    %v1270 = vpack.c.bf16 %v1243, %v1241
    %v1271 = vpack.c.bf16 %v1247, %v1245
    %v1272 = vpack.c.bf16 %v1251, %v1249
    %v1273 = vpack.c.bf16 %v1255, %v1253
    %v1274 = vpack.c.bf16 %v1259, %v1257
    %v1275 = vpack.c.bf16 %v1263, %v1261
    %v1276 = vpack.c.bf16 %v1267, %v1265
    %v1277 = vlaneseq
    %v1278 = vshrl.u32 %v1277, 7
    %v1279 = vsub.s32 5, %v1278
    %v1280 = vrot.slane %v1026, %v1279
    %vm1281 = vcmask 31744
    %v1283 = vsel %vm1281, %v1269, 0
    %v1286 = vsel %vm1281, %v1270, 0
    %v1289 = vsel %vm1281, %v1271, 0
    %v1292 = vsel %vm1281, %v1272, 0
    %v1295 = vsel %vm1281, %v1273, 0
    %v1298 = vsel %vm1281, %v1274, 0
    %v1301 = vsel %vm1281, %v1275, 0
    %v1304 = vsel %vm1281, %v1276, 0
    %vm1306 = vcmask 1041408
    %v1308 = vsel %vm1306, %v1268, 0
    %1310 = vmatprep.subr.bf16.mxu0 0
    %1311 = vmatpush1.bf16.msra.mxu0 0
    %1312 = vmatprep.subr.bf16.mxu0 0
    %1313 = vmatpush1.bf16.msra.mxu0 0
    %1314 = vmatprep.subr.bf16.mxu0 0
    %1315 = vmatpush1.bf16.msra.mxu0 0
    %1316 = vmatprep.subr.bf16.mxu0 0
    %1317 = vmatpush1.bf16.msra.mxu0 0
    %1318 = vmatprep.subr.bf16.mxu0 0
    %1319 = vmatpush1.bf16.msra.mxu0 0
    %1320 = vmatprep.subr.bf16.mxu0 0
    %1321 = vmatpush1.bf16.msra.mxu0 0
    %1322 = vmatprep.subr.bf16.mxu0 0
    %1323 = vmatpush1.bf16.msra.mxu0 0
    %1324 = vmatprep.subr.bf16.mxu0 0
    %1325 = vmatpush1.bf16.msra.mxu0 %v1308
    %1326 = vmatprep.subr.bf16.mxu0 0
    %1327 = vmatpush2.bf16.msra.mxu0 0
    %1328 = vmatprep.subr.bf16.mxu0 0
    %1329 = vmatpush2.bf16.msra.mxu0 0
    %1330 = vmatprep.subr.bf16.mxu0 0
    %1331 = vmatpush2.bf16.msra.mxu0 0
    %1332 = vmatprep.subr.bf16.mxu0 0
    %1333 = vmatpush2.bf16.msra.mxu0 0
    %1334 = vmatprep.subr.bf16.mxu0 0
    %1335 = vmatpush2.bf16.msra.mxu0 0
    %1336 = vmatprep.subr.bf16.mxu0 0
    %1337 = vmatpush2.bf16.msra.mxu0 0
    %1338 = vmatprep.subr.bf16.mxu0 0
    %1339 = vmatpush2.bf16.msra.mxu0 0
    %1340 = vmatprep.subr.bf16.mxu0 0
    %1341 = vmatpush2.bf16.msra.mxu0 0
    %1342 = vmatprep.mubr.bf16.mxu0 0
    %1343 = vmatmul.mubr.bf16.gmra.mxu0 %v1283
    %v1344 = vpop.f32.mrf.mxu0
    %v1345 = vadd.f32 %v1280, %v1344
    %v1346 = vpop.f32.mrf.mxu0
    %v1347 = vpop.f32.mrf.mxu0
    %v1348 = vadd.f32 %v1280, %v1347
    %v1349 = vpop.f32.mrf.mxu0
    %1350 = vmatprep.mubr.bf16.mxu0 0
    %1351 = vmatmul.mubr.bf16.gmra.mxu0 %v1286
    %v1352 = vpop.f32.mrf.mxu0
    %v1353 = vadd.f32 %v1280, %v1352
    %v1354 = vpop.f32.mrf.mxu0
    %v1355 = vpop.f32.mrf.mxu0
    %v1356 = vadd.f32 %v1280, %v1355
    %v1357 = vpop.f32.mrf.mxu0
    %1358 = vmatprep.mubr.bf16.mxu0 0
    %1359 = vmatmul.mubr.bf16.gmra.mxu0 %v1289
    %v1360 = vpop.f32.mrf.mxu0
    %v1361 = vadd.f32 %v1280, %v1360
    %v1362 = vpop.f32.mrf.mxu0
    %v1363 = vpop.f32.mrf.mxu0
    %v1364 = vadd.f32 %v1280, %v1363
    %v1365 = vpop.f32.mrf.mxu0
    %1366 = vmatprep.mubr.bf16.mxu0 0
    %1367 = vmatmul.mubr.bf16.gmra.mxu0 %v1292
    %v1368 = vpop.f32.mrf.mxu0
    %v1369 = vadd.f32 %v1280, %v1368
    %v1370 = vpop.f32.mrf.mxu0
    %v1371 = vpop.f32.mrf.mxu0
    %v1372 = vadd.f32 %v1280, %v1371
    %v1373 = vpop.f32.mrf.mxu0
    %1374 = vmatprep.mubr.bf16.mxu0 0
    %1375 = vmatmul.mubr.bf16.gmra.mxu0 %v1295
    %v1376 = vpop.f32.mrf.mxu0
    %v1377 = vadd.f32 %v1280, %v1376
    %v1378 = vpop.f32.mrf.mxu0
    %v1379 = vpop.f32.mrf.mxu0
    %v1380 = vadd.f32 %v1280, %v1379
    %v1381 = vpop.f32.mrf.mxu0
    %1382 = vmatprep.mubr.bf16.mxu0 0
    %1383 = vmatmul.mubr.bf16.gmra.mxu0 %v1298
    %v1384 = vpop.f32.mrf.mxu0
    %v1385 = vadd.f32 %v1280, %v1384
    %v1386 = vpop.f32.mrf.mxu0
    %v1387 = vpop.f32.mrf.mxu0
    %v1388 = vadd.f32 %v1280, %v1387
    %v1389 = vpop.f32.mrf.mxu0
    %1390 = vmatprep.mubr.bf16.mxu0 0
    %1391 = vmatmul.mubr.bf16.gmra.mxu0 %v1301
    %v1392 = vpop.f32.mrf.mxu0
    %v1393 = vadd.f32 %v1280, %v1392
    %v1394 = vpop.f32.mrf.mxu0
    %v1395 = vpop.f32.mrf.mxu0
    %v1396 = vadd.f32 %v1280, %v1395
    %v1397 = vpop.f32.mrf.mxu0
    %1398 = vmatprep.mubr.bf16.mxu0 0
    %1399 = vmatmul.mubr.bf16.gmra.mxu0 %v1304
    %v1400 = vpop.f32.mrf.mxu0
    %v1401 = vadd.f32 %v1280, %v1400
    %v1402 = vpop.f32.mrf.mxu0
    %v1403 = vpop.f32.mrf.mxu0
    %v1404 = vadd.f32 %v1280, %v1403
    %v1405 = vpop.f32.mrf.mxu0
    %1406 = vdwg.mxu0
    %v1407 = vmul.f32 %v1345, %v1345
    %v1408 = vmul.f32 %v1348, %v1348
    %v1409 = vmul.f32 %v1353, %v1353
    %v1410 = vmul.f32 %v1356, %v1356
    %v1411 = vmul.f32 %v1361, %v1361
    %v1412 = vmul.f32 %v1364, %v1364
    %v1413 = vmul.f32 %v1369, %v1369
    %v1414 = vmul.f32 %v1372, %v1372
    %v1415 = vmul.f32 %v1377, %v1377
    %v1416 = vmul.f32 %v1380, %v1380
    %v1417 = vmul.f32 %v1385, %v1385
    %v1418 = vmul.f32 %v1388, %v1388
    %v1419 = vmul.f32 %v1393, %v1393
    %v1420 = vmul.f32 %v1396, %v1396
    %v1421 = vmul.f32 %v1401, %v1401
    %v1422 = vmul.f32 %v1404, %v1404
    %vm1423 = vcmask 64512
    %v1424 = vsel %vm1423, %v1407, 0.0
    %1425 = vadd.xlane.f32.xlu0 %v1424
    %v1426 = vpop.xlane.xlu0 %1425
    %v1427 = vsel %vm1423, %v1408, 0.0
    %1428 = vadd.xlane.f32.xlu0 %v1427
    %v1429 = vpop.xlane.xlu0 %1428
    %v1430 = vsel %vm1423, %v1409, 0.0
    %1431 = vadd.xlane.f32.xlu0 %v1430
    %v1432 = vpop.xlane.xlu0 %1431
    %v1433 = vsel %vm1423, %v1410, 0.0
    %1434 = vadd.xlane.f32.xlu0 %v1433
    %v1435 = vpop.xlane.xlu0 %1434
    %v1436 = vsel %vm1423, %v1411, 0.0
    %1437 = vadd.xlane.f32.xlu0 %v1436
    %v1438 = vpop.xlane.xlu0 %1437
    %v1439 = vsel %vm1423, %v1412, 0.0
    %1440 = vadd.xlane.f32.xlu0 %v1439
    %v1441 = vpop.xlane.xlu0 %1440
    %v1442 = vsel %vm1423, %v1413, 0.0
    %1443 = vadd.xlane.f32.xlu0 %v1442
    %v1444 = vpop.xlane.xlu0 %1443
    %v1445 = vsel %vm1423, %v1414, 0.0
    %1446 = vadd.xlane.f32.xlu0 %v1445
    %v1447 = vpop.xlane.xlu0 %1446
    %v1448 = vsel %vm1423, %v1415, 0.0
    %1449 = vadd.xlane.f32.xlu0 %v1448
    %v1450 = vpop.xlane.xlu0 %1449
    %v1451 = vsel %vm1423, %v1416, 0.0
    %1452 = vadd.xlane.f32.xlu0 %v1451
    %v1453 = vpop.xlane.xlu0 %1452
    %v1454 = vsel %vm1423, %v1417, 0.0
    %1455 = vadd.xlane.f32.xlu0 %v1454
    %v1456 = vpop.xlane.xlu0 %1455
    %v1457 = vsel %vm1423, %v1418, 0.0
    %1458 = vadd.xlane.f32.xlu0 %v1457
    %v1459 = vpop.xlane.xlu0 %1458
    %v1460 = vsel %vm1423, %v1419, 0.0
    %1461 = vadd.xlane.f32.xlu0 %v1460
    %v1462 = vpop.xlane.xlu0 %1461
    %v1463 = vsel %vm1423, %v1420, 0.0
    %1464 = vadd.xlane.f32.xlu0 %v1463
    %v1465 = vpop.xlane.xlu0 %1464
    %v1466 = vsel %vm1423, %v1421, 0.0
    %1467 = vadd.xlane.f32.xlu0 %v1466
    %v1468 = vpop.xlane.xlu0 %1467
    %v1469 = vsel %vm1423, %v1422, 0.0
    %1470 = vadd.xlane.f32.xlu0 %v1469
    %v1471 = vpop.xlane.xlu0 %1470
    %v1472 = vadd.f32 %v1426, 1e-08
    %v1473 = vadd.f32 %v1429, 1e-08
    %v1474 = vadd.f32 %v1432, 1e-08
    %v1475 = vadd.f32 %v1435, 1e-08
    %v1476 = vadd.f32 %v1438, 1e-08
    %v1477 = vadd.f32 %v1441, 1e-08
    %v1478 = vadd.f32 %v1444, 1e-08
    %v1479 = vadd.f32 %v1447, 1e-08
    %v1480 = vadd.f32 %v1450, 1e-08
    %v1481 = vadd.f32 %v1453, 1e-08
    %v1482 = vadd.f32 %v1456, 1e-08
    %v1483 = vadd.f32 %v1459, 1e-08
    %v1484 = vadd.f32 %v1462, 1e-08
    %v1485 = vadd.f32 %v1465, 1e-08
    %v1486 = vadd.f32 %v1468, 1e-08
    %v1487 = vadd.f32 %v1471, 1e-08
    %v1488 = vrsqrt.pop %v1472
    %v1489 = vrsqrt.pop %v1473
    %v1490 = vrsqrt.pop %v1474
    %v1491 = vrsqrt.pop %v1475
    %v1492 = vrsqrt.pop %v1476
    %v1493 = vrsqrt.pop %v1477
    %v1494 = vrsqrt.pop %v1478
    %v1495 = vrsqrt.pop %v1479
    %v1496 = vrsqrt.pop %v1480
    %v1497 = vrsqrt.pop %v1481
    %v1498 = vrsqrt.pop %v1482
    %v1499 = vrsqrt.pop %v1483
    %v1500 = vrsqrt.pop %v1484
    %v1501 = vrsqrt.pop %v1485
    %v1502 = vrsqrt.pop %v1486
    %v1503 = vrsqrt.pop %v1487
    %v1504 = vmul.f32 %v1488, 2.828427
    %v1505 = vmul.f32 %v1489, 2.828427
    %v1506 = vmul.f32 %v1490, 2.828427
    %v1507 = vmul.f32 %v1491, 2.828427
    %v1508 = vmul.f32 %v1492, 2.828427
    %v1509 = vmul.f32 %v1493, 2.828427
    %v1510 = vmul.f32 %v1494, 2.828427
    %v1511 = vmul.f32 %v1495, 2.828427
    %v1512 = vmul.f32 %v1496, 2.828427
    %v1513 = vmul.f32 %v1497, 2.828427
    %v1514 = vmul.f32 %v1498, 2.828427
    %v1515 = vmul.f32 %v1499, 2.828427
    %v1516 = vmul.f32 %v1500, 2.828427
    %v1517 = vmul.f32 %v1501, 2.828427
    %v1518 = vmul.f32 %v1502, 2.828427
    %v1519 = vmul.f32 %v1503, 2.828427
    %v1520 = vmul.f32 %v1345, %v1504
    %v1521 = vmul.f32 %v1348, %v1505
    %v1522 = vmul.f32 %v1353, %v1506
    %v1523 = vmul.f32 %v1356, %v1507
    %v1524 = vmul.f32 %v1361, %v1508
    %v1525 = vmul.f32 %v1364, %v1509
    %v1526 = vmul.f32 %v1369, %v1510
    %v1527 = vmul.f32 %v1372, %v1511
    %v1528 = vmul.f32 %v1377, %v1512
    %v1529 = vmul.f32 %v1380, %v1513
    %v1530 = vmul.f32 %v1385, %v1514
    %v1531 = vmul.f32 %v1388, %v1515
    %v1532 = vmul.f32 %v1393, %v1516
    %v1533 = vmul.f32 %v1396, %v1517
    %v1534 = vmul.f32 %v1401, %v1518
    %v1535 = vmul.f32 %v1404, %v1519
    %1536 = vrot.lane.b32.xlu0 %v593, 64
    %v1537 = vpop.permute.xlu0 %1536
    %1538 = vrot.lane.b32.xlu0 %v594, 64
    %v1539 = vpop.permute.xlu0 %1538
    %1540 = vrot.lane.b32.xlu0 %v595, 64
    %v1541 = vpop.permute.xlu0 %1540
    %1542 = vrot.lane.b32.xlu0 %v596, 64
    %v1543 = vpop.permute.xlu0 %1542
    %1544 = vrot.lane.b32.xlu0 %v597, 64
    %v1545 = vpop.permute.xlu0 %1544
    %1546 = vrot.lane.b32.xlu0 %v598, 64
    %v1547 = vpop.permute.xlu0 %1546
    %1548 = vrot.lane.b32.xlu0 %v599, 64
    %v1549 = vpop.permute.xlu0 %1548
    %1550 = vrot.lane.b32.xlu0 %v600, 64
    %v1551 = vpop.permute.xlu0 %1550
    %1552 = vrot.lane.b32.xlu0 %v601, 64
    %v1553 = vpop.permute.xlu0 %1552
    %1554 = vrot.lane.b32.xlu0 %v602, 64
    %v1555 = vpop.permute.xlu0 %1554
    %1556 = vrot.lane.b32.xlu0 %v603, 64
    %v1557 = vpop.permute.xlu0 %1556
    %1558 = vrot.lane.b32.xlu0 %v604, 64
    %v1559 = vpop.permute.xlu0 %1558
    %1560 = vrot.lane.b32.xlu0 %v605, 64
    %v1561 = vpop.permute.xlu0 %1560
    %1562 = vrot.lane.b32.xlu0 %v606, 64
    %v1563 = vpop.permute.xlu0 %1562
    %1564 = vrot.lane.b32.xlu0 %v607, 64
    %v1565 = vpop.permute.xlu0 %1564
    %1566 = vrot.lane.b32.xlu0 %v608, 64
    %v1567 = vpop.permute.xlu0 %1566
    %v1584 = vadd.f32 %v1520, %v1537
    %v1585 = vadd.f32 %v1521, %v1539
    %v1586 = vadd.f32 %v1522, %v1541
    %v1587 = vadd.f32 %v1523, %v1543
    %v1588 = vadd.f32 %v1524, %v1545
    %v1589 = vadd.f32 %v1525, %v1547
    %v1590 = vadd.f32 %v1526, %v1549
    %v1591 = vadd.f32 %v1527, %v1551
    %v1592 = vadd.f32 %v1528, %v1553
    %v1593 = vadd.f32 %v1529, %v1555
    %v1594 = vadd.f32 %v1530, %v1557
    %v1595 = vadd.f32 %v1531, %v1559
    %v1596 = vadd.f32 %v1532, %v1561
    %v1597 = vadd.f32 %v1533, %v1563
    %v1598 = vadd.f32 %v1534, %v1565
    %v1599 = vadd.f32 %v1535, %v1567
    %v1600 = vld [vmem:[#allocation5 + $0x60] sm:$0xf]
    %v1601 = vld [vmem:[#allocation5 + $0x78] sm:$0x8]
    %v1602 = vunpack.c.l.bf16 %v1601
    %v1603 = vpack.c.bf16 %v1585, %v1584
    %v1604 = vpack.c.bf16 %v1587, %v1586
    %v1605 = vpack.c.bf16 %v1589, %v1588
    %v1606 = vpack.c.bf16 %v1591, %v1590
    %v1607 = vpack.c.bf16 %v1593, %v1592
    %v1608 = vpack.c.bf16 %v1595, %v1594
    %v1609 = vpack.c.bf16 %v1597, %v1596
    %v1610 = vpack.c.bf16 %v1599, %v1598
    %v1611 = vlaneseq
    %v1612 = vshrl.u32 %v1611, 7
    %v1613 = vsub.s32 6, %v1612
    %v1614 = vrot.slane %v1602, %v1613
    %v1616 = vsel %vm1423, %v1603, 0
    %v1619 = vsel %vm1423, %v1604, 0
    %v1622 = vsel %vm1423, %v1605, 0
    %v1625 = vsel %vm1423, %v1606, 0
    %v1628 = vsel %vm1423, %v1607, 0
    %v1631 = vsel %vm1423, %v1608, 0
    %v1634 = vsel %vm1423, %v1609, 0
    %v1637 = vsel %vm1423, %v1610, 0
    %vm1639 = vcmask 1043456
    %v1641 = vsel %vm1639, %v1600, 0
    %1643 = vmatprep.subr.bf16.mxu0 0
    %1644 = vmatpush1.bf16.msra.mxu0 0
    %1645 = vmatprep.subr.bf16.mxu0 0
    %1646 = vmatpush1.bf16.msra.mxu0 0
    %1647 = vmatprep.subr.bf16.mxu0 0
    %1648 = vmatpush1.bf16.msra.mxu0 0
    %1649 = vmatprep.subr.bf16.mxu0 0
    %1650 = vmatpush1.bf16.msra.mxu0 0
    %1651 = vmatprep.subr.bf16.mxu0 0
    %1652 = vmatpush1.bf16.msra.mxu0 0
    %1653 = vmatprep.subr.bf16.mxu0 0
    %1654 = vmatpush1.bf16.msra.mxu0 0
    %1655 = vmatprep.subr.bf16.mxu0 0
    %1656 = vmatpush1.bf16.msra.mxu0 0
    %1657 = vmatprep.subr.bf16.mxu0 0
    %1658 = vmatpush1.bf16.msra.mxu0 %v1641
    %1659 = vmatprep.subr.bf16.mxu0 0
    %1660 = vmatpush2.bf16.msra.mxu0 0
    %1661 = vmatprep.subr.bf16.mxu0 0
    %1662 = vmatpush2.bf16.msra.mxu0 0
    %1663 = vmatprep.subr.bf16.mxu0 0
    %1664 = vmatpush2.bf16.msra.mxu0 0
    %1665 = vmatprep.subr.bf16.mxu0 0
    %1666 = vmatpush2.bf16.msra.mxu0 0
    %1667 = vmatprep.subr.bf16.mxu0 0
    %1668 = vmatpush2.bf16.msra.mxu0 0
    %1669 = vmatprep.subr.bf16.mxu0 0
    %1670 = vmatpush2.bf16.msra.mxu0 0
    %1671 = vmatprep.subr.bf16.mxu0 0
    %1672 = vmatpush2.bf16.msra.mxu0 0
    %1673 = vmatprep.subr.bf16.mxu0 0
    %1674 = vmatpush2.bf16.msra.mxu0 0
    %1675 = vmatprep.mubr.bf16.mxu0 0
    %1676 = vmatmul.mubr.bf16.gmra.mxu0 %v1616
    %v1677 = vpop.f32.mrf.mxu0
    %v1678 = vadd.f32 %v1614, %v1677
    %v1679 = vpop.f32.mrf.mxu0
    %v1680 = vpop.f32.mrf.mxu0
    %v1681 = vadd.f32 %v1614, %v1680
    %v1682 = vpop.f32.mrf.mxu0
    %1683 = vmatprep.mubr.bf16.mxu0 0
    %1684 = vmatmul.mubr.bf16.gmra.mxu0 %v1619
    %v1685 = vpop.f32.mrf.mxu0
    %v1686 = vadd.f32 %v1614, %v1685
    %v1687 = vpop.f32.mrf.mxu0
    %v1688 = vpop.f32.mrf.mxu0
    %v1689 = vadd.f32 %v1614, %v1688
    %v1690 = vpop.f32.mrf.mxu0
    %1691 = vmatprep.mubr.bf16.mxu0 0
    %1692 = vmatmul.mubr.bf16.gmra.mxu0 %v1622
    %v1693 = vpop.f32.mrf.mxu0
    %v1694 = vadd.f32 %v1614, %v1693
    %v1695 = vpop.f32.mrf.mxu0
    %v1696 = vpop.f32.mrf.mxu0
    %v1697 = vadd.f32 %v1614, %v1696
    %v1698 = vpop.f32.mrf.mxu0
    %1699 = vmatprep.mubr.bf16.mxu0 0
    %1700 = vmatmul.mubr.bf16.gmra.mxu0 %v1625
    %v1701 = vpop.f32.mrf.mxu0
    %v1702 = vadd.f32 %v1614, %v1701
    %v1703 = vpop.f32.mrf.mxu0
    %v1704 = vpop.f32.mrf.mxu0
    %v1705 = vadd.f32 %v1614, %v1704
    %v1706 = vpop.f32.mrf.mxu0
    %1707 = vmatprep.mubr.bf16.mxu0 0
    %1708 = vmatmul.mubr.bf16.gmra.mxu0 %v1628
    %v1709 = vpop.f32.mrf.mxu0
    %v1710 = vadd.f32 %v1614, %v1709
    %v1711 = vpop.f32.mrf.mxu0
    %v1712 = vpop.f32.mrf.mxu0
    %v1713 = vadd.f32 %v1614, %v1712
    %v1714 = vpop.f32.mrf.mxu0
    %1715 = vmatprep.mubr.bf16.mxu0 0
    %1716 = vmatmul.mubr.bf16.gmra.mxu0 %v1631
    %v1717 = vpop.f32.mrf.mxu0
    %v1718 = vadd.f32 %v1614, %v1717
    %v1719 = vpop.f32.mrf.mxu0
    %v1720 = vpop.f32.mrf.mxu0
    %v1721 = vadd.f32 %v1614, %v1720
    %v1722 = vpop.f32.mrf.mxu0
    %1723 = vmatprep.mubr.bf16.mxu0 0
    %1724 = vmatmul.mubr.bf16.gmra.mxu0 %v1634
    %v1725 = vpop.f32.mrf.mxu0
    %v1726 = vadd.f32 %v1614, %v1725
    %v1727 = vpop.f32.mrf.mxu0
    %v1728 = vpop.f32.mrf.mxu0
    %v1729 = vadd.f32 %v1614, %v1728
    %v1730 = vpop.f32.mrf.mxu0
    %1731 = vmatprep.mubr.bf16.mxu0 0
    %1732 = vmatmul.mubr.bf16.gmra.mxu0 %v1637
    %v1733 = vpop.f32.mrf.mxu0
    %v1734 = vadd.f32 %v1614, %v1733
    %v1735 = vpop.f32.mrf.mxu0
    %v1736 = vpop.f32.mrf.mxu0
    %v1737 = vadd.f32 %v1614, %v1736
    %v1738 = vpop.f32.mrf.mxu0
    %1739 = vdwg.mxu0
    %v1740 = vxor.u32 %v1678, 2147483648
    %v1741 = vxor.u32 %v1681, 2147483648
    %v1742 = vxor.u32 %v1686, 2147483648
    %v1743 = vxor.u32 %v1689, 2147483648
    %v1744 = vxor.u32 %v1694, 2147483648
    %v1745 = vxor.u32 %v1697, 2147483648
    %v1746 = vxor.u32 %v1702, 2147483648
    %v1747 = vxor.u32 %v1705, 2147483648
    %v1748 = vxor.u32 %v1710, 2147483648
    %v1749 = vxor.u32 %v1713, 2147483648
    %v1750 = vxor.u32 %v1718, 2147483648
    %v1751 = vxor.u32 %v1721, 2147483648
    %v1752 = vxor.u32 %v1726, 2147483648
    %v1753 = vxor.u32 %v1729, 2147483648
    %v1754 = vxor.u32 %v1734, 2147483648
    %v1755 = vxor.u32 %v1737, 2147483648
    %v1756 = vmul.f32 %v1740, 1.442695
    %v1757 = vpow.pop %v1756
    %v1758 = vmul.f32 %v1741, 1.442695
    %v1759 = vpow.pop %v1758
    %v1760 = vmul.f32 %v1742, 1.442695
    %v1761 = vpow.pop %v1760
    %v1762 = vmul.f32 %v1743, 1.442695
    %v1763 = vpow.pop %v1762
    %v1764 = vmul.f32 %v1744, 1.442695
    %v1765 = vpow.pop %v1764
    %v1766 = vmul.f32 %v1745, 1.442695
    %v1767 = vpow.pop %v1766
    %v1768 = vmul.f32 %v1746, 1.442695
    %v1769 = vpow.pop %v1768
    %v1770 = vmul.f32 %v1747, 1.442695
    %v1771 = vpow.pop %v1770
    %v1772 = vmul.f32 %v1748, 1.442695
    %v1773 = vpow.pop %v1772
    %v1774 = vmul.f32 %v1749, 1.442695
    %v1775 = vpow.pop %v1774
    %v1776 = vmul.f32 %v1750, 1.442695
    %v1777 = vpow.pop %v1776
    %v1778 = vmul.f32 %v1751, 1.442695
    %v1779 = vpow.pop %v1778
    %v1780 = vmul.f32 %v1752, 1.442695
    %v1781 = vpow.pop %v1780
    %v1782 = vmul.f32 %v1753, 1.442695
    %v1783 = vpow.pop %v1782
    %v1784 = vmul.f32 %v1754, 1.442695
    %v1785 = vpow.pop %v1784
    %v1786 = vmul.f32 %v1755, 1.442695
    %v1787 = vpow.pop %v1786
    %v1788 = vadd.f32 %v1757, 1.0
    %v1789 = vadd.f32 %v1759, 1.0
    %v1790 = vadd.f32 %v1761, 1.0
    %v1791 = vadd.f32 %v1763, 1.0
    %v1792 = vadd.f32 %v1765, 1.0
    %v1793 = vadd.f32 %v1767, 1.0
    %v1794 = vadd.f32 %v1769, 1.0
    %v1795 = vadd.f32 %v1771, 1.0
    %v1796 = vadd.f32 %v1773, 1.0
    %v1797 = vadd.f32 %v1775, 1.0
    %v1798 = vadd.f32 %v1777, 1.0
    %v1799 = vadd.f32 %v1779, 1.0
    %v1800 = vadd.f32 %v1781, 1.0
    %v1801 = vadd.f32 %v1783, 1.0
    %v1802 = vadd.f32 %v1785, 1.0
    %v1803 = vadd.f32 %v1787, 1.0
    %v1804 = vrcp.pop %v1788
    %v1805 = vmul.f32 1.0, %v1804
    %v1806 = vrcp.pop %v1789
    %v1807 = vmul.f32 1.0, %v1806
    %v1808 = vrcp.pop %v1790
    %v1809 = vmul.f32 1.0, %v1808
    %v1810 = vrcp.pop %v1791
    %v1811 = vmul.f32 1.0, %v1810
    %v1812 = vrcp.pop %v1792
    %v1813 = vmul.f32 1.0, %v1812
    %v1814 = vrcp.pop %v1793
    %v1815 = vmul.f32 1.0, %v1814
    %v1816 = vrcp.pop %v1794
    %v1817 = vmul.f32 1.0, %v1816
    %v1818 = vrcp.pop %v1795
    %v1819 = vmul.f32 1.0, %v1818
    %v1820 = vrcp.pop %v1796
    %v1821 = vmul.f32 1.0, %v1820
    %v1822 = vrcp.pop %v1797
    %v1823 = vmul.f32 1.0, %v1822
    %v1824 = vrcp.pop %v1798
    %v1825 = vmul.f32 1.0, %v1824
    %v1826 = vrcp.pop %v1799
    %v1827 = vmul.f32 1.0, %v1826
    %v1828 = vrcp.pop %v1800
    %v1829 = vmul.f32 1.0, %v1828
    %v1830 = vrcp.pop %v1801
    %v1831 = vmul.f32 1.0, %v1830
    %v1832 = vrcp.pop %v1802
    %v1833 = vmul.f32 1.0, %v1832
    %v1834 = vrcp.pop %v1803
    %v1835 = vmul.f32 1.0, %v1834
    %1836 = vst [vmem:[#allocation7] sm:$0xff] %v1805
    %1837 = vst [vmem:[#allocation7 + $0x8] sm:$0xff] %v1807
    %1838 = vst [vmem:[#allocation7 + $0x10] sm:$0xff] %v1809
    %1839 = vst [vmem:[#allocation7 + $0x18] sm:$0xff] %v1811
    %1840 = vst [vmem:[#allocation7 + $0x20] sm:$0xff] %v1813
    %1841 = vst [vmem:[#allocation7 + $0x28] sm:$0xff] %v1815
    %1842 = vst [vmem:[#allocation7 + $0x30] sm:$0xff] %v1817
    %1843 = vst [vmem:[#allocation7 + $0x38] sm:$0xff] %v1819
    %1844 = vst [vmem:[#allocation7 + $0x40] sm:$0xff] %v1821
    %1845 = vst [vmem:[#allocation7 + $0x48] sm:$0xff] %v1823
    %1846 = vst [vmem:[#allocation7 + $0x50] sm:$0xff] %v1825
    %1847 = vst [vmem:[#allocation7 + $0x58] sm:$0xff] %v1827
    %1848 = vst [vmem:[#allocation7 + $0x60] sm:$0xff] %v1829
    %1849 = vst [vmem:[#allocation7 + $0x68] sm:$0xff] %v1831
    %1850 = vst [vmem:[#allocation7 + $0x70] sm:$0xff] %v1833
    %1851 = vst [vmem:[#allocation7 + $0x78] sm:$0xff] %v1835
    // Predicated region
    $region18: #{actor_forward.1} parent=1 // pred_check
      _
    $region19: #{actor_forward.1} parent=1 // pred_check_branch
      %1853 = sbr.rel (0) target = $region21
    $region20: #{actor_forward.1} parent=1 // pred_region
      %s1855 = ssub.s32 2048, 2048
      %1856 = vsyncadd [#allocation4], %s1855
      %s1857 = sshll.u32 [#allocation7], 4
      %s1858 = int_to_ptr.vmem [resolvable:$true] %s1857
      %1863 = dma.vmem_to_hbm [thread:$0]  %s1858, 2048, %s2, [#allocation4], 128, 128, 8
    $region21: #{actor_forward.1} parent=1 // pred_fallthru
      _
    // Predicated region
    $region22: #{actor_forward.1} parent=1 // pred_check
      _
    $region23: #{actor_forward.1} parent=1 // pred_check_branch
      %1865 = sbr.rel (0) target = $region25
    $region24: #{actor_forward.1} parent=1 // pred_region
      %1866 = dma.done [#allocation4], 2048
    $region25: #{actor_forward.1} parent=1 // pred_fallthru
      _
    %1867 = vsyncpa [#allocation3], 1
    %1868 = vsyncpa [#allocation6], 1
    %1869 = vsyncpa [#allocation4], 1

</llo_original>
